<compile_context>
chip_gen: v6e
topology: v6e:2x2x1
jax: 0.10.0
libtpu: 0.0.40
codegen_flags: <defaults>
</compile_context>

<pallas_src>
import functools

import jax
import jax.numpy as jnp
from jax import lax
from jax.experimental import pallas as pl
from jax.experimental.pallas import tpu as pltpu


def _round_up(x, m):
    return (x + m - 1) // m * m


def _vmem_limit_bytes():
    """Generation-aware scoped-VMEM limit (v7x: 64 MiB phys, v5e/v6e: 128 MiB)."""
    try:
        cap = int(pltpu.get_tpu_info().vmem_capacity_bytes)
    except Exception:
        cap = 64 * 1024 * 1024
    return (96 if cap >= 100 * 1024 * 1024 else 48) * 1024 * 1024


def _make_kernel(n_valid, tile_n, n_tiles, inner_cw, emit_pfeat):
    """Per-(batch, d2-split, n-tile) kernel body.

    Refs (after squeezed batch dim):
      x_ref:     (TILE_N, 4)        bf16
      w_i:       (C_in_i, C_out_i)  bf16   (BN folded, VMEM resident)
      b_i:       (1, C_out_i)       f32
      gfeat_ref: (1, d2_chunk)      f32    output & running-max accumulator
      pfeat_ref: (TILE_N, d0)       f32    output (only when emit_pfeat)
    """
    has_partial = (n_valid % tile_n) != 0
    last_n = n_tiles - 1

    def body(x_ref, w0_ref, b0_ref, w1_ref, b1_ref, w2_ref, b2_ref,
             gfeat_ref, pfeat_ref):
        n_idx = pl.program_id(2)

        @pl.when(n_idx == 0)
        def _():
            gfeat_ref[...] = jnp.full_like(gfeat_ref, -jnp.inf)

        x = x_ref[...]                                        # (TILE_N, 4) bf16

        # layer 0: relu(bn0(conv0(x))) -- BN folded into w0/b0.
        # TODO(synk): on v6e/v7x this K=4 matmul could be 4 VPU broadcast-FMAs.
        h0 = jnp.dot(x, w0_ref[...], preferred_element_type=jnp.float32)
        h0 = jnp.maximum(h0 + b0_ref[...], 0.0)               # (TILE_N, d0) f32
        if emit_pfeat:
            # TODO(synk): a lane-dense transposed (d0, TILE_N) bf16 store would
            # further cut pfeat store traffic; kept (TILE_N, d0) f32 here.
            pfeat_ref[...] = h0                               # point_feat

        # layer 1
        h1 = jnp.dot(h0.astype(jnp.bfloat16), w1_ref[...],
                     preferred_element_type=jnp.float32)
        h1 = jnp.maximum(h1 + b1_ref[...], 0.0)               # (TILE_N, d1) f32
        h1b = h1.astype(jnp.bfloat16)

        d2_chunk = w2_ref.shape[1]
        n_inner = d2_chunk // inner_cw

        def layer2_rowmax(mask_rows):
            # Layer 2 (no activation), chunked over output columns; bias is
            # deferred past the max (added once on the last tile below).
            if mask_rows:
                row = (n_idx * tile_n
                       + lax.broadcasted_iota(jnp.int32, (tile_n, 1), 0))
                valid = row < n_valid
            for c in range(n_inner):
                lo = c * inner_cw
                h2c = jnp.dot(h1b, w2_ref[:, lo:lo + inner_cw],
                              preferred_element_type=jnp.float32)
                if mask_rows:
                    h2c = jnp.where(valid, h2c, -jnp.inf)
                cmax = jnp.max(h2c, axis=0, keepdims=True)    # (1, inner_cw)
                gfeat_ref[:, lo:lo + inner_cw] = jnp.maximum(
                    gfeat_ref[:, lo:lo + inner_cw], cmax)

        if has_partial:
            # Only the single partial last tile pays for the -inf row mask.
            @pl.when(n_idx < last_n)
            def _():
                layer2_rowmax(False)

            @pl.when(n_idx == last_n)
            def _():
                layer2_rowmax(True)
        else:
            layer2_rowmax(False)

        # No ReLU after layer 2, so the per-column bias commutes with the
        # row-max: add it once after the reduction over points completes.
        @pl.when(n_idx == last_n)
        def _():
            gfeat_ref[...] = gfeat_ref[...] + b2_ref[...]

    if emit_pfeat:
        def kernel(x_ref, w0, b0, w1, b1, w2, b2, gfeat_ref, pfeat_ref):
            body(x_ref, w0, b0, w1, b1, w2, b2, gfeat_ref, pfeat_ref)
    else:
        def kernel(x_ref, w0, b0, w1, b1, w2, b2, gfeat_ref):
            body(x_ref, w0, b0, w1, b1, w2, b2, gfeat_ref, None)
    return kernel


def _const_spec(shape):
    nd = len(shape)
    return pl.BlockSpec(shape, lambda b, j, n, nd=nd: (0,) * nd)


@functools.partial(jax.jit, static_argnames=("global_feat", "tile_n"))
def pointnet_feat(x_bcn, params, global_feat=True, tile_n=2048):
    """x_bcn: (B, 4, N) float32 in the PyTorch NCW convention.

    Returns (B, d2) for global_feat=True, else (B, d2 + d0, N) (NCW concat of
    the repeated global feature with the first-layer point features).
    """
    B, c_in, N = x_bcn.shape
    assert c_in == 4
    (w0, b0), (w1, b1), (w2, b2) = params
    d0, d1, d2 = w0.shape[1], w1.shape[1], w2.shape[1]

    # The kernel is compute-bound (x tile is tiny in HBM), so prefer large
    # point tiles; per-grid-step overhead is amortized and the chunked layer-2
    # keeps intermediates small even at tile_n=2048.
    tile_n = _round_up(max(1, min(int(tile_n), N)), 8)
    n_pad = _round_up(N, tile_n)
    n_tiles = n_pad // tile_n

    # channel-last bf16 activations (padded point rows are masked in-kernel).
    x = jnp.transpose(x_bcn, (0, 2, 1)).astype(jnp.bfloat16)   # (B, N, 4)
    if n_pad != N:
        x = jnp.pad(x, ((0, 0), (0, n_pad - N), (0, 0)))

    # bf16 MXU weights (BN already folded); biases stay f32 on the VPU.
    w0b = w0.astype(jnp.bfloat16)
    w1b = w1.astype(jnp.bfloat16)
    w2b = w2.astype(jnp.bfloat16)
    b0f = jnp.asarray(b0, jnp.float32).reshape(1, -1)
    b1f = jnp.asarray(b1, jnp.float32).reshape(1, -1)
    b2f = jnp.asarray(b2, jnp.float32).reshape(1, -1)

    emit_pfeat = not global_feat
    # Split d2 across a second parallel grid axis when the batch alone cannot
    # feed both v7x TensorCores; the column-wise max needs no cross-core
    # combine.  (Disabled on the pfeat path to avoid duplicate pfeat writes.)
    d2_splits = 2 if (global_feat and B == 1 and d2 % 256 == 0) else 1
    d2_chunk = d2 // d2_splits
    inner_cw = 256 if d2_chunk % 256 == 0 else d2_chunk

    x_spec = pl.BlockSpec((None, tile_n, 4), lambda b, j, n: (b, n, 0))
    w0_spec = _const_spec(w0b.shape)
    b0_spec = _const_spec(b0f.shape)
    w1_spec = _const_spec(w1b.shape)
    b1_spec = _const_spec(b1f.shape)
    w2_spec = pl.BlockSpec((d1, d2_chunk), lambda b, j, n: (0, j))
    b2_spec = pl.BlockSpec((1, d2_chunk), lambda b, j, n: (0, j))

    gfeat_shape = jax.ShapeDtypeStruct((B, 1, d2), jnp.float32)
    gfeat_spec = pl.BlockSpec((None, 1, d2_chunk), lambda b, j, n: (b, 0, j))

    if emit_pfeat:
        out_shape = (gfeat_shape,
                     jax.ShapeDtypeStruct((B, n_pad, d0), jnp.float32))
        out_specs = (gfeat_spec,
                     pl.BlockSpec((None, tile_n, d0), lambda b, j, n: (b, n, 0)))
    else:
        out_shape = gfeat_shape
        out_specs = gfeat_spec

    kernel = _make_kernel(N, tile_n, n_tiles, inner_cw, emit_pfeat)

    outs = pl.pallas_call(
        kernel,
        out_shape=out_shape,
        grid=(B, d2_splits, n_tiles),        # points (reduction) axis innermost
        in_specs=[x_spec, w0_spec, b0_spec, w1_spec, b1_spec, w2_spec, b2_spec],
        out_specs=out_specs,
        compiler_params=pltpu.CompilerParams(
            dimension_semantics=("parallel", "parallel", "arbitrary"),
            vmem_limit_bytes=_vmem_limit_bytes()),
    )(x, w0b, b0f, w1b, b1f, w2b, b2f)

    if global_feat:
        return outs.reshape(B, d2)

    gfeat, pfeat = outs
    gfeat = gfeat.reshape(B, d2)
    pfeat = pfeat[:, :N, :]                                     # drop padding
    # Match the PyTorch NCW concat output: (B, d2 + d0, N).
    g_rep = jnp.broadcast_to(gfeat[:, :, None], (B, d2, N))
    pfeat_cn = jnp.transpose(pfeat, (0, 2, 1))
    return jnp.concatenate([g_rep, pfeat_cn], axis=1)


def init_params(key, dims=(64, 128, 1024), eps=1e-5):
    """Deterministic synthetic params; BN (inference mode) folded into conv."""
    in_dims = (4,) + tuple(dims[:-1])
    params = []
    for c_in, c_out in zip(in_dims, dims):
        key, kw, kb, kg, kbe, km, kv = jax.random.split(key, 7)
        w = jax.random.normal(kw, (c_in, c_out), jnp.float32) * 0.1
        b = jax.random.normal(kb, (c_out,), jnp.float32) * 0.1
        gamma = jax.random.uniform(kg, (c_out,), jnp.float32, 0.5, 1.5)
        beta = jax.random.normal(kbe, (c_out,), jnp.float32) * 0.1
        mean = jax.random.normal(km, (c_out,), jnp.float32) * 0.1
        var = jax.random.uniform(kv, (c_out,), jnp.float32, 0.5, 1.5)
        s = gamma / jnp.sqrt(var + eps)
        w_eff = w * s[None, :]
        b_eff = ((b - mean) * s + beta).reshape(1, c_out)
        params.append((w_eff, b_eff))
    return params


def ref_forward(x_bcn, params, global_feat=True):
    """Pure-JAX reference with the same bf16-operand / f32-accum matmul recipe."""
    x = jnp.transpose(x_bcn, (0, 2, 1)).astype(jnp.float32)     # (B, N, 4)
    (w0, b0), (w1, b1), (w2, b2) = params

    def lin(h, w, b):
        return jnp.dot(h.astype(jnp.bfloat16), w.astype(jnp.bfloat16),
                       preferred_element_type=jnp.float32) + jnp.asarray(
                           b, jnp.float32).reshape(1, -1)

    h0 = jnp.maximum(lin(x, w0, b0), 0.0)
    h1 = jnp.maximum(lin(h0, w1, b1), 0.0)
    h2 = lin(h1, w2, b2)
    g = jnp.max(h2, axis=1)                                     # (B, d2)
    if global_feat:
        return g
    B, _, N = x_bcn.shape
    d2 = w2.shape[1]
    g_rep = jnp.broadcast_to(g[:, :, None], (B, d2, N))
    return jnp.concatenate([g_rep, jnp.transpose(h0, (0, 2, 1))], axis=1)


def _check(out, ref, name):
    assert out.shape == ref.shape, (name, out.shape, ref.shape)
    assert jnp.allclose(out, ref, rtol=2e-3, atol=2e-3), \
        (name, float(jnp.max(jnp.abs(out - ref))))


if __name__ == "__main__":
    key = jax.random.PRNGKey(0)
    k_param, k_x = jax.random.split(key)

    dims = (64, 128, 1024)
    params = init_params(k_param, dims)

    # Small demo shapes; N=40 with TILE_N=16 exercises multi-tile accumulation
    # and the gated mask on the partial last tile (n_pad=48).
    B, C_IN, N = 2, 4, 40
    TILE_N = 16
    x = jax.random.normal(k_x, (B, C_IN, N), jnp.float32)

    # 1) global_feat=True (module default): gfeat only, partial last tile.
    out_g = jax.block_until_ready(
        pointnet_feat(x, params, global_feat=True, tile_n=TILE_N))
    _check(out_g, ref_forward(x, params, global_feat=True), "global")

    # 2) global_feat=False: concat of repeated global feature + point features.
    out_c = jax.block_until_ready(
        pointnet_feat(x, params, global_feat=False, tile_n=TILE_N))
    _check(out_c, ref_forward(x, params, global_feat=False), "concat")

    # 3) B=1 exercises the d2-split (megacore) parallel axis.
    x1 = x[:1]
    out_1 = jax.block_until_ready(
        pointnet_feat(x1, params, global_feat=True, tile_n=TILE_N))
    _check(out_1, ref_forward(x1, params, global_feat=True), "b1_split")

    # 4) N divisible by TILE_N exercises the mask-free full-tile path.
    x_even = x[:, :, :32]
    out_e = jax.block_until_ready(
        pointnet_feat(x_even, params, global_feat=True, tile_n=TILE_N))
    _check(out_e, ref_forward(x_even, params, global_feat=True), "even")

    print("KERNEL_OK")
</pallas_src>

<mosaic_0001>
module attributes {stable_mosaic.version = 11 : i64} {
  func.func @kernel(%arg0: i32, %arg1: i32, %arg2: i32, %arg3: memref<1x16x4xbf16, #tpu.memory_space<vmem>>, %arg4: memref<4x64xbf16, #tpu.memory_space<vmem>>, %arg5: memref<1x64xf32, #tpu.memory_space<vmem>>, %arg6: memref<64x128xbf16, #tpu.memory_space<vmem>>, %arg7: memref<1x128xf32, #tpu.memory_space<vmem>>, %arg8: memref<128x1024xbf16, #tpu.memory_space<vmem>>, %arg9: memref<1x1024xf32, #tpu.memory_space<vmem>>, %arg10: memref<1x1x1024xf32, #tpu.memory_space<vmem>>) attributes {dimension_semantics = [#tpu.dimension_semantics<parallel>, #tpu.dimension_semantics<parallel>, #tpu.dimension_semantics<arbitrary>], iteration_bounds = array<i64: 2, 1, 3>, scalar_prefetch = 0 : i64, scratch_operands = 0 : i64, tpu.core_type = #tpu.core_type<tc>, window_params = [{transform_indices = @transform_0, window_bounds = array<i64: 1, 16, 4>}, {pipeline_mode = #tpu.pipeline_mode<synchronous>, transform_indices = @transform_1, window_bounds = array<i64: 4, 64>}, {pipeline_mode = #tpu.pipeline_mode<synchronous>, transform_indices = @transform_2, window_bounds = array<i64: 1, 64>}, {pipeline_mode = #tpu.pipeline_mode<synchronous>, transform_indices = @transform_3, window_bounds = array<i64: 64, 128>}, {pipeline_mode = #tpu.pipeline_mode<synchronous>, transform_indices = @transform_4, window_bounds = array<i64: 1, 128>}, {transform_indices = @transform_5, window_bounds = array<i64: 128, 1024>}, {transform_indices = @transform_6, window_bounds = array<i64: 1, 1024>}, {transform_indices = @transform_7, window_bounds = array<i64: 1, 1, 1024>}]} {
    %c0_i32 = arith.constant 0 : i32
    %0 = arith.cmpi eq, %arg2, %c0_i32 : i32
    %1 = arith.extui %0 : i1 to i32
    %c0_i32_0 = arith.constant 0 : i32
    %2 = arith.cmpi ne, %1, %c0_i32_0 : i32
    scf.if %2 {
      %cst_19 = arith.constant 0xFF800000 : f32
      %30 = vector.broadcast %cst_19 : f32 to vector<1x1024xf32>
      %c0_20 = arith.constant 0 : index
      %c0_21 = arith.constant 0 : index
      %c0_22 = arith.constant 0 : index
      %31 = vector.load %arg10[%c0_20, %c0_21, %c0_22] : memref<1x1x1024xf32, #tpu.memory_space<vmem>>, vector<1x1x1024xf32>
      %32 = vector.shape_cast %31 : vector<1x1x1024xf32> to vector<1x1024xf32>
      %33 = vector.shape_cast %30 : vector<1x1024xf32> to vector<1x1x1024xf32>
      tpu.vector_store %arg10[%c0_20, %c0_21, %c0_22], %33 {strides = array<i32>} : memref<1x1x1024xf32, #tpu.memory_space<vmem>>, vector<1x1x1024xf32>,
    } else {
    }
    %c0 = arith.constant 0 : index
    %c0_1 = arith.constant 0 : index
    %c0_2 = arith.constant 0 : index
    %3 = vector.load %arg3[%c0, %c0_1, %c0_2] : memref<1x16x4xbf16, #tpu.memory_space<vmem>>, vector<1x16x4xbf16>
    %4 = vector.shape_cast %3 : vector<1x16x4xbf16> to vector<16x4xbf16>
    %c0_3 = arith.constant 0 : index
    %c0_4 = arith.constant 0 : index
    %5 = vector.load %arg4[%c0_3, %c0_4] : memref<4x64xbf16, #tpu.memory_space<vmem>>, vector<4x64xbf16>
    %cst = arith.constant dense<0.000000e+00> : vector<16x64xf32>
    %6 = tpu.matmul %4, %5, %cst {dimension_numbers = #tpu.dot_dimension_numbers<[1], [0], [0], [1], [0, 0, 1, 1], [], []>} : vector<16x4xbf16>, vector<4x64xbf16>, vector<16x64xf32> -> vector<16x64xf32>
    %c0_5 = arith.constant 0 : index
    %c0_6 = arith.constant 0 : index
    %7 = vector.load %arg5[%c0_5, %c0_6] : memref<1x64xf32, #tpu.memory_space<vmem>>, vector<1x64xf32>
    %8 = vector.broadcast %7 : vector<1x64xf32> to vector<16x64xf32>
    %9 = arith.addf %6, %8 : vector<16x64xf32>
    %cst_7 = arith.constant 0.000000e+00 : f32
    %10 = vector.broadcast %cst_7 : f32 to vector<16x64xf32>
    %11 = arith.maximumf %9, %10 : vector<16x64xf32>
    %12 = arith.truncf %11 : vector<16x64xf32> to vector<16x64xbf16>
    %c0_8 = arith.constant 0 : index
    %c0_9 = arith.constant 0 : index
    %13 = vector.load %arg6[%c0_8, %c0_9] : memref<64x128xbf16, #tpu.memory_space<vmem>>, vector<64x128xbf16>
    %cst_10 = arith.constant dense<0.000000e+00> : vector<16x128xf32>
    %14 = tpu.matmul %12, %13, %cst_10 {dimension_numbers = #tpu.dot_dimension_numbers<[1], [0], [0], [1], [0, 0, 1, 1], [], []>} : vector<16x64xbf16>, vector<64x128xbf16>, vector<16x128xf32> -> vector<16x128xf32>
    %c0_11 = arith.constant 0 : index
    %c0_12 = arith.constant 0 : index
    %15 = vector.load %arg7[%c0_11, %c0_12] : memref<1x128xf32, #tpu.memory_space<vmem>>, vector<1x128xf32>
    %16 = vector.broadcast %15 : vector<1x128xf32> to vector<16x128xf32>
    %17 = arith.addf %14, %16 : vector<16x128xf32>
    %cst_13 = arith.constant 0.000000e+00 : f32
    %18 = vector.broadcast %cst_13 : f32 to vector<16x128xf32>
    %19 = arith.maximumf %17, %18 : vector<16x128xf32>
    %20 = arith.truncf %19 : vector<16x128xf32> to vector<16x128xbf16>
    %c2_i32 = arith.constant 2 : i32
    %21 = arith.cmpi slt, %arg2, %c2_i32 : i32
    %22 = arith.extui %21 : i1 to i32
    %c0_i32_14 = arith.constant 0 : i32
    %23 = arith.cmpi ne, %22, %c0_i32_14 : i32
    scf.if %23 {
      %c0_19 = arith.constant 0 : index
      %c0_20 = arith.constant 0 : index
      %30 = vector.load %arg8[%c0_19, %c0_20] : memref<128x1024xbf16, #tpu.memory_space<vmem>>, vector<128x256xbf16>
      %cst_21 = arith.constant dense<0.000000e+00> : vector<16x256xf32>
      %31 = tpu.matmul %20, %30, %cst_21 {dimension_numbers = #tpu.dot_dimension_numbers<[1], [0], [0], [1], [0, 0, 1, 1], [], []>} : vector<16x128xbf16>, vector<128x256xbf16>, vector<16x256xf32> -> vector<16x256xf32>
      %cst_22 = arith.constant dense<0xFF800000> : vector<256xf32>
      %32 = vector.multi_reduction <maximumf>, %31, %cst_22 [0] : vector<16x256xf32> to vector<256xf32>
      %33 = vector.shape_cast %32 : vector<256xf32> to vector<1x256xf32>
      %c0_23 = arith.constant 0 : index
      %c0_24 = arith.constant 0 : index
      %c0_25 = arith.constant 0 : index
      %34 = vector.load %arg10[%c0_23, %c0_24, %c0_25] : memref<1x1x1024xf32, #tpu.memory_space<vmem>>, vector<1x1x256xf32>
      %35 = vector.shape_cast %34 : vector<1x1x256xf32> to vector<1x256xf32>
      %36 = arith.maximumf %35, %33 : vector<1x256xf32>
      %c0_26 = arith.constant 0 : index
      %c0_27 = arith.constant 0 : index
      %c0_28 = arith.constant 0 : index
      %37 = vector.load %arg10[%c0_26, %c0_27, %c0_28] : memref<1x1x1024xf32, #tpu.memory_space<vmem>>, vector<1x1x256xf32>
      %38 = vector.shape_cast %37 : vector<1x1x256xf32> to vector<1x256xf32>
      %39 = vector.shape_cast %36 : vector<1x256xf32> to vector<1x1x256xf32>
      tpu.vector_store %arg10[%c0_26, %c0_27, %c0_28], %39 {strides = array<i32>} : memref<1x1x1024xf32, #tpu.memory_space<vmem>>, vector<1x1x256xf32>,
      %c0_29 = arith.constant 0 : index
      %c256 = arith.constant 256 : index
      %40 = vector.load %arg8[%c0_29, %c256] : memref<128x1024xbf16, #tpu.memory_space<vmem>>, vector<128x256xbf16>
      %cst_30 = arith.constant dense<0.000000e+00> : vector<16x256xf32>
      %41 = tpu.matmul %20, %40, %cst_30 {dimension_numbers = #tpu.dot_dimension_numbers<[1], [0], [0], [1], [0, 0, 1, 1], [], []>} : vector<16x128xbf16>, vector<128x256xbf16>, vector<16x256xf32> -> vector<16x256xf32>
      %cst_31 = arith.constant dense<0xFF800000> : vector<256xf32>
      %42 = vector.multi_reduction <maximumf>, %41, %cst_31 [0] : vector<16x256xf32> to vector<256xf32>
      %43 = vector.shape_cast %42 : vector<256xf32> to vector<1x256xf32>
      %c0_32 = arith.constant 0 : index
      %c0_33 = arith.constant 0 : index
      %c256_34 = arith.constant 256 : index
      %44 = vector.load %arg10[%c0_32, %c0_33, %c256_34] : memref<1x1x1024xf32, #tpu.memory_space<vmem>>, vector<1x1x256xf32>
      %45 = vector.shape_cast %44 : vector<1x1x256xf32> to vector<1x256xf32>
      %46 = arith.maximumf %45, %43 : vector<1x256xf32>
      %c0_35 = arith.constant 0 : index
      %c0_36 = arith.constant 0 : index
      %c256_37 = arith.constant 256 : index
      %47 = vector.load %arg10[%c0_35, %c0_36, %c256_37] : memref<1x1x1024xf32, #tpu.memory_space<vmem>>, vector<1x1x256xf32>
      %48 = vector.shape_cast %47 : vector<1x1x256xf32> to vector<1x256xf32>
      %49 = vector.shape_cast %46 : vector<1x256xf32> to vector<1x1x256xf32>
      tpu.vector_store %arg10[%c0_35, %c0_36, %c256_37], %49 {strides = array<i32>} : memref<1x1x1024xf32, #tpu.memory_space<vmem>>, vector<1x1x256xf32>,
      %c0_38 = arith.constant 0 : index
      %c512 = arith.constant 512 : index
      %50 = vector.load %arg8[%c0_38, %c512] : memref<128x1024xbf16, #tpu.memory_space<vmem>>, vector<128x256xbf16>
      %cst_39 = arith.constant dense<0.000000e+00> : vector<16x256xf32>
      %51 = tpu.matmul %20, %50, %cst_39 {dimension_numbers = #tpu.dot_dimension_numbers<[1], [0], [0], [1], [0, 0, 1, 1], [], []>} : vector<16x128xbf16>, vector<128x256xbf16>, vector<16x256xf32> -> vector<16x256xf32>
      %cst_40 = arith.constant dense<0xFF800000> : vector<256xf32>
      %52 = vector.multi_reduction <maximumf>, %51, %cst_40 [0] : vector<16x256xf32> to vector<256xf32>
      %53 = vector.shape_cast %52 : vector<256xf32> to vector<1x256xf32>
      %c0_41 = arith.constant 0 : index
      %c0_42 = arith.constant 0 : index
      %c512_43 = arith.constant 512 : index
      %54 = vector.load %arg10[%c0_41, %c0_42, %c512_43] : memref<1x1x1024xf32, #tpu.memory_space<vmem>>, vector<1x1x256xf32>
      %55 = vector.shape_cast %54 : vector<1x1x256xf32> to vector<1x256xf32>
      %56 = arith.maximumf %55, %53 : vector<1x256xf32>
      %c0_44 = arith.constant 0 : index
      %c0_45 = arith.constant 0 : index
      %c512_46 = arith.constant 512 : index
      %57 = vector.load %arg10[%c0_44, %c0_45, %c512_46] : memref<1x1x1024xf32, #tpu.memory_space<vmem>>, vector<1x1x256xf32>
      %58 = vector.shape_cast %57 : vector<1x1x256xf32> to vector<1x256xf32>
      %59 = vector.shape_cast %56 : vector<1x256xf32> to vector<1x1x256xf32>
      tpu.vector_store %arg10[%c0_44, %c0_45, %c512_46], %59 {strides = array<i32>} : memref<1x1x1024xf32, #tpu.memory_space<vmem>>, vector<1x1x256xf32>,
      %c0_47 = arith.constant 0 : index
      %c768 = arith.constant 768 : index
      %60 = vector.load %arg8[%c0_47, %c768] : memref<128x1024xbf16, #tpu.memory_space<vmem>>, vector<128x256xbf16>
      %cst_48 = arith.constant dense<0.000000e+00> : vector<16x256xf32>
      %61 = tpu.matmul %20, %60, %cst_48 {dimension_numbers = #tpu.dot_dimension_numbers<[1], [0], [0], [1], [0, 0, 1, 1], [], []>} : vector<16x128xbf16>, vector<128x256xbf16>, vector<16x256xf32> -> vector<16x256xf32>
      %cst_49 = arith.constant dense<0xFF800000> : vector<256xf32>
      %62 = vector.multi_reduction <maximumf>, %61, %cst_49 [0] : vector<16x256xf32> to vector<256xf32>
      %63 = vector.shape_cast %62 : vector<256xf32> to vector<1x256xf32>
      %c0_50 = arith.constant 0 : index
      %c0_51 = arith.constant 0 : index
      %c768_52 = arith.constant 768 : index
      %64 = vector.load %arg10[%c0_50, %c0_51, %c768_52] : memref<1x1x1024xf32, #tpu.memory_space<vmem>>, vector<1x1x256xf32>
      %65 = vector.shape_cast %64 : vector<1x1x256xf32> to vector<1x256xf32>
      %66 = arith.maximumf %65, %63 : vector<1x256xf32>
      %c0_53 = arith.constant 0 : index
      %c0_54 = arith.constant 0 : index
      %c768_55 = arith.constant 768 : index
      %67 = vector.load %arg10[%c0_53, %c0_54, %c768_55] : memref<1x1x1024xf32, #tpu.memory_space<vmem>>, vector<1x1x256xf32>
      %68 = vector.shape_cast %67 : vector<1x1x256xf32> to vector<1x256xf32>
      %69 = vector.shape_cast %66 : vector<1x256xf32> to vector<1x1x256xf32>
      tpu.vector_store %arg10[%c0_53, %c0_54, %c768_55], %69 {strides = array<i32>} : memref<1x1x1024xf32, #tpu.memory_space<vmem>>, vector<1x1x256xf32>,
    } else {
    }
    %c2_i32_15 = arith.constant 2 : i32
    %24 = arith.cmpi eq, %arg2, %c2_i32_15 : i32
    %25 = arith.extui %24 : i1 to i32
    %c0_i32_16 = arith.constant 0 : i32
    %26 = arith.cmpi ne, %25, %c0_i32_16 : i32
    scf.if %26 {
      %c16_i32 = arith.constant 16 : i32
      %30 = arith.muli %arg2, %c16_i32 : i32
      %31 = tpu.iota {dimensions = array<i32: 0>} : vector<16x1xi32>
      %32 = vector.broadcast %30 : i32 to vector<16x1xi32>
      %33 = arith.addi %32, %31 : vector<16x1xi32>
      %c40_i32 = arith.constant 40 : i32
      %34 = vector.broadcast %c40_i32 : i32 to vector<16x1xi32>
      %35 = arith.cmpi slt, %33, %34 : vector<16x1xi32>
      %c0_19 = arith.constant 0 : index
      %c0_20 = arith.constant 0 : index
      %36 = vector.load %arg8[%c0_19, %c0_20] : memref<128x1024xbf16, #tpu.memory_space<vmem>>, vector<128x256xbf16>
      %cst_21 = arith.constant dense<0.000000e+00> : vector<16x256xf32>
      %37 = tpu.matmul %20, %36, %cst_21 {dimension_numbers = #tpu.dot_dimension_numbers<[1], [0], [0], [1], [0, 0, 1, 1], [], []>} : vector<16x128xbf16>, vector<128x256xbf16>, vector<16x256xf32> -> vector<16x256xf32>
      %cst_22 = arith.constant 0xFF800000 : f32
      %38 = vector.shape_cast %35 : vector<16x1xi1> to vector<16x1xi1>
      %39 = vector.broadcast %38 : vector<16x1xi1> to vector<16x256xi1>
      %40 = vector.broadcast %cst_22 : f32 to vector<16x256xf32>
      %41 = arith.select %39, %37, %40 : vector<16x256xi1>, vector<16x256xf32>
      %cst_23 = arith.constant dense<0xFF800000> : vector<256xf32>
      %42 = vector.multi_reduction <maximumf>, %41, %cst_23 [0] : vector<16x256xf32> to vector<256xf32>
      %43 = vector.shape_cast %42 : vector<256xf32> to vector<1x256xf32>
      %c0_24 = arith.constant 0 : index
      %c0_25 = arith.constant 0 : index
      %c0_26 = arith.constant 0 : index
      %44 = vector.load %arg10[%c0_24, %c0_25, %c0_26] : memref<1x1x1024xf32, #tpu.memory_space<vmem>>, vector<1x1x256xf32>
      %45 = vector.shape_cast %44 : vector<1x1x256xf32> to vector<1x256xf32>
      %46 = arith.maximumf %45, %43 : vector<1x256xf32>
      %c0_27 = arith.constant 0 : index
      %c0_28 = arith.constant 0 : index
      %c0_29 = arith.constant 0 : index
      %47 = vector.load %arg10[%c0_27, %c0_28, %c0_29] : memref<1x1x1024xf32, #tpu.memory_space<vmem>>, vector<1x1x256xf32>
      %48 = vector.shape_cast %47 : vector<1x1x256xf32> to vector<1x256xf32>
      %49 = vector.shape_cast %46 : vector<1x256xf32> to vector<1x1x256xf32>
      tpu.vector_store %arg10[%c0_27, %c0_28, %c0_29], %49 {strides = array<i32>} : memref<1x1x1024xf32, #tpu.memory_space<vmem>>, vector<1x1x256xf32>,
      %c0_30 = arith.constant 0 : index
      %c256 = arith.constant 256 : index
      %50 = vector.load %arg8[%c0_30, %c256] : memref<128x1024xbf16, #tpu.memory_space<vmem>>, vector<128x256xbf16>
      %cst_31 = arith.constant dense<0.000000e+00> : vector<16x256xf32>
      %51 = tpu.matmul %20, %50, %cst_31 {dimension_numbers = #tpu.dot_dimension_numbers<[1], [0], [0], [1], [0, 0, 1, 1], [], []>} : vector<16x128xbf16>, vector<128x256xbf16>, vector<16x256xf32> -> vector<16x256xf32>
      %cst_32 = arith.constant 0xFF800000 : f32
      %52 = vector.shape_cast %35 : vector<16x1xi1> to vector<16x1xi1>
      %53 = vector.broadcast %52 : vector<16x1xi1> to vector<16x256xi1>
      %54 = vector.broadcast %cst_32 : f32 to vector<16x256xf32>
      %55 = arith.select %53, %51, %54 : vector<16x256xi1>, vector<16x256xf32>
      %cst_33 = arith.constant dense<0xFF800000> : vector<256xf32>
      %56 = vector.multi_reduction <maximumf>, %55, %cst_33 [0] : vector<16x256xf32> to vector<256xf32>
      %57 = vector.shape_cast %56 : vector<256xf32> to vector<1x256xf32>
      %c0_34 = arith.constant 0 : index
      %c0_35 = arith.constant 0 : index
      %c256_36 = arith.constant 256 : index
      %58 = vector.load %arg10[%c0_34, %c0_35, %c256_36] : memref<1x1x1024xf32, #tpu.memory_space<vmem>>, vector<1x1x256xf32>
      %59 = vector.shape_cast %58 : vector<1x1x256xf32> to vector<1x256xf32>
      %60 = arith.maximumf %59, %57 : vector<1x256xf32>
      %c0_37 = arith.constant 0 : index
      %c0_38 = arith.constant 0 : index
      %c256_39 = arith.constant 256 : index
      %61 = vector.load %arg10[%c0_37, %c0_38, %c256_39] : memref<1x1x1024xf32, #tpu.memory_space<vmem>>, vector<1x1x256xf32>
      %62 = vector.shape_cast %61 : vector<1x1x256xf32> to vector<1x256xf32>
      %63 = vector.shape_cast %60 : vector<1x256xf32> to vector<1x1x256xf32>
      tpu.vector_store %arg10[%c0_37, %c0_38, %c256_39], %63 {strides = array<i32>} : memref<1x1x1024xf32, #tpu.memory_space<vmem>>, vector<1x1x256xf32>,
      %c0_40 = arith.constant 0 : index
      %c512 = arith.constant 512 : index
      %64 = vector.load %arg8[%c0_40, %c512] : memref<128x1024xbf16, #tpu.memory_space<vmem>>, vector<128x256xbf16>
      %cst_41 = arith.constant dense<0.000000e+00> : vector<16x256xf32>
      %65 = tpu.matmul %20, %64, %cst_41 {dimension_numbers = #tpu.dot_dimension_numbers<[1], [0], [0], [1], [0, 0, 1, 1], [], []>} : vector<16x128xbf16>, vector<128x256xbf16>, vector<16x256xf32> -> vector<16x256xf32>
      %cst_42 = arith.constant 0xFF800000 : f32
      %66 = vector.shape_cast %35 : vector<16x1xi1> to vector<16x1xi1>
      %67 = vector.broadcast %66 : vector<16x1xi1> to vector<16x256xi1>
      %68 = vector.broadcast %cst_42 : f32 to vector<16x256xf32>
      %69 = arith.select %67, %65, %68 : vector<16x256xi1>, vector<16x256xf32>
      %cst_43 = arith.constant dense<0xFF800000> : vector<256xf32>
      %70 = vector.multi_reduction <maximumf>, %69, %cst_43 [0] : vector<16x256xf32> to vector<256xf32>
      %71 = vector.shape_cast %70 : vector<256xf32> to vector<1x256xf32>
      %c0_44 = arith.constant 0 : index
      %c0_45 = arith.constant 0 : index
      %c512_46 = arith.constant 512 : index
      %72 = vector.load %arg10[%c0_44, %c0_45, %c512_46] : memref<1x1x1024xf32, #tpu.memory_space<vmem>>, vector<1x1x256xf32>
      %73 = vector.shape_cast %72 : vector<1x1x256xf32> to vector<1x256xf32>
      %74 = arith.maximumf %73, %71 : vector<1x256xf32>
      %c0_47 = arith.constant 0 : index
      %c0_48 = arith.constant 0 : index
      %c512_49 = arith.constant 512 : index
      %75 = vector.load %arg10[%c0_47, %c0_48, %c512_49] : memref<1x1x1024xf32, #tpu.memory_space<vmem>>, vector<1x1x256xf32>
      %76 = vector.shape_cast %75 : vector<1x1x256xf32> to vector<1x256xf32>
      %77 = vector.shape_cast %74 : vector<1x256xf32> to vector<1x1x256xf32>
      tpu.vector_store %arg10[%c0_47, %c0_48, %c512_49], %77 {strides = array<i32>} : memref<1x1x1024xf32, #tpu.memory_space<vmem>>, vector<1x1x256xf32>,
      %c0_50 = arith.constant 0 : index
      %c768 = arith.constant 768 : index
      %78 = vector.load %arg8[%c0_50, %c768] : memref<128x1024xbf16, #tpu.memory_space<vmem>>, vector<128x256xbf16>
      %cst_51 = arith.constant dense<0.000000e+00> : vector<16x256xf32>
      %79 = tpu.matmul %20, %78, %cst_51 {dimension_numbers = #tpu.dot_dimension_numbers<[1], [0], [0], [1], [0, 0, 1, 1], [], []>} : vector<16x128xbf16>, vector<128x256xbf16>, vector<16x256xf32> -> vector<16x256xf32>
      %cst_52 = arith.constant 0xFF800000 : f32
      %80 = vector.shape_cast %35 : vector<16x1xi1> to vector<16x1xi1>
      %81 = vector.broadcast %80 : vector<16x1xi1> to vector<16x256xi1>
      %82 = vector.broadcast %cst_52 : f32 to vector<16x256xf32>
      %83 = arith.select %81, %79, %82 : vector<16x256xi1>, vector<16x256xf32>
      %cst_53 = arith.constant dense<0xFF800000> : vector<256xf32>
      %84 = vector.multi_reduction <maximumf>, %83, %cst_53 [0] : vector<16x256xf32> to vector<256xf32>
      %85 = vector.shape_cast %84 : vector<256xf32> to vector<1x256xf32>
      %c0_54 = arith.constant 0 : index
      %c0_55 = arith.constant 0 : index
      %c768_56 = arith.constant 768 : index
      %86 = vector.load %arg10[%c0_54, %c0_55, %c768_56] : memref<1x1x1024xf32, #tpu.memory_space<vmem>>, vector<1x1x256xf32>
      %87 = vector.shape_cast %86 : vector<1x1x256xf32> to vector<1x256xf32>
      %88 = arith.maximumf %87, %85 : vector<1x256xf32>
      %c0_57 = arith.constant 0 : index
      %c0_58 = arith.constant 0 : index
      %c768_59 = arith.constant 768 : index
      %89 = vector.load %arg10[%c0_57, %c0_58, %c768_59] : memref<1x1x1024xf32, #tpu.memory_space<vmem>>, vector<1x1x256xf32>
      %90 = vector.shape_cast %89 : vector<1x1x256xf32> to vector<1x256xf32>
      %91 = vector.shape_cast %88 : vector<1x256xf32> to vector<1x1x256xf32>
      tpu.vector_store %arg10[%c0_57, %c0_58, %c768_59], %91 {strides = array<i32>} : memref<1x1x1024xf32, #tpu.memory_space<vmem>>, vector<1x1x256xf32>,
    } else {
    }
    %c2_i32_17 = arith.constant 2 : i32
    %27 = arith.cmpi eq, %arg2, %c2_i32_17 : i32
    %28 = arith.extui %27 : i1 to i32
    %c0_i32_18 = arith.constant 0 : i32
    %29 = arith.cmpi ne, %28, %c0_i32_18 : i32
    scf.if %29 {
      %c0_19 = arith.constant 0 : index
      %c0_20 = arith.constant 0 : index
      %c0_21 = arith.constant 0 : index
      %30 = vector.load %arg10[%c0_19, %c0_20, %c0_21] : memref<1x1x1024xf32, #tpu.memory_space<vmem>>, vector<1x1x1024xf32>
      %31 = vector.shape_cast %30 : vector<1x1x1024xf32> to vector<1x1024xf32>
      %c0_22 = arith.constant 0 : index
      %c0_23 = arith.constant 0 : index
      %32 = vector.load %arg9[%c0_22, %c0_23] : memref<1x1024xf32, #tpu.memory_space<vmem>>, vector<1x1024xf32>
      %33 = arith.addf %31, %32 : vector<1x1024xf32>
      %c0_24 = arith.constant 0 : index
      %c0_25 = arith.constant 0 : index
      %c0_26 = arith.constant 0 : index
      %34 = vector.load %arg10[%c0_24, %c0_25, %c0_26] : memref<1x1x1024xf32, #tpu.memory_space<vmem>>, vector<1x1x1024xf32>
      %35 = vector.shape_cast %34 : vector<1x1x1024xf32> to vector<1x1024xf32>
      %36 = vector.shape_cast %33 : vector<1x1024xf32> to vector<1x1x1024xf32>
      tpu.vector_store %arg10[%c0_24, %c0_25, %c0_26], %36 {strides = array<i32>} : memref<1x1x1024xf32, #tpu.memory_space<vmem>>, vector<1x1x1024xf32>,
    } else {
    }
    return
  }
  func.func @transform_0(%arg0: i32, %arg1: i32, %arg2: i32) -> (i32, i32, i32) {
    %c0_i32 = arith.constant 0 : i32
    %c0_i32_0 = arith.constant 0 : i32
    return %arg0, %arg2, %c0_i32 : i32, i32, i32
  }
  func.func @transform_1(%arg0: i32, %arg1: i32, %arg2: i32) -> (i32, i32) {
    %c0_i32 = arith.constant 0 : i32
    %c0_i32_0 = arith.constant 0 : i32
    %c0_i32_1 = arith.constant 0 : i32
    return %c0_i32, %c0_i32_0 : i32, i32
  }
  func.func @transform_2(%arg0: i32, %arg1: i32, %arg2: i32) -> (i32, i32) {
    %c0_i32 = arith.constant 0 : i32
    %c0_i32_0 = arith.constant 0 : i32
    %c0_i32_1 = arith.constant 0 : i32
    return %c0_i32, %c0_i32_0 : i32, i32
  }
  func.func @transform_3(%arg0: i32, %arg1: i32, %arg2: i32) -> (i32, i32) {
    %c0_i32 = arith.constant 0 : i32
    %c0_i32_0 = arith.constant 0 : i32
    %c0_i32_1 = arith.constant 0 : i32
    return %c0_i32, %c0_i32_0 : i32, i32
  }
  func.func @transform_4(%arg0: i32, %arg1: i32, %arg2: i32) -> (i32, i32) {
    %c0_i32 = arith.constant 0 : i32
    %c0_i32_0 = arith.constant 0 : i32
    %c0_i32_1 = arith.constant 0 : i32
    return %c0_i32, %c0_i32_0 : i32, i32
  }
  func.func @transform_5(%arg0: i32, %arg1: i32, %arg2: i32) -> (i32, i32) {
    %c0_i32 = arith.constant 0 : i32
    %c0_i32_0 = arith.constant 0 : i32
    return %c0_i32, %arg1 : i32, i32
  }
  func.func @transform_6(%arg0: i32, %arg1: i32, %arg2: i32) -> (i32, i32) {
    %c0_i32 = arith.constant 0 : i32
    %c0_i32_0 = arith.constant 0 : i32
    return %c0_i32, %arg1 : i32, i32
  }
  func.func @transform_7(%arg0: i32, %arg1: i32, %arg2: i32) -> (i32, i32, i32) {
    %c0_i32 = arith.constant 0 : i32
    %c0_i32_0 = arith.constant 0 : i32
    return %arg0, %c0_i32, %arg1 : i32, i32, i32
  }
}

</mosaic_0001>

<llo_original>
// kernel: pointnet_feat.1
$region0: #{pointnet_feat.1}
  #allocation0 [shape = 'u32[]', space=smem, size = 0x4, offset = 0x4, fixed_abs, tag = 'smem constant byte address 0x4 - core index']
  #allocation1 [shape = 'u32[144,128]{1,0:T(1,128)}', space=vmem, size = 0x12000, scoped, tag = 'internal scratch']
  %s0 = inlined_call_operand.vmem [shape: bf16[2,48,4], index: 0, kind: input, shape index: {}]
  %s1 = inlined_call_operand.vmem [shape: bf16[4,64], index: 1, kind: input, shape index: {}]
  %s2 = inlined_call_operand.vmem [shape: f32[1,64], index: 2, kind: input, shape index: {}]
  %s3 = inlined_call_operand.vmem [shape: bf16[64,128], index: 3, kind: input, shape index: {}]
  %s4 = inlined_call_operand.vmem [shape: f32[1,128], index: 4, kind: input, shape index: {}]
  %s5 = inlined_call_operand.vmem [shape: bf16[128,1024], index: 5, kind: input, shape index: {}]
  %s6 = inlined_call_operand.vmem [shape: f32[1,1024], index: 6, kind: input, shape index: {}]
  %s7 = inlined_call_operand.vmem [shape: f32[2,1,1024], index: 7, kind: output, shape index: {}]
  %s8 = sld [smem:[#allocation0]]
  $region73: #{pointnet_feat.1} parent=0
    _
  %s10 = ssub.s32 1, %s8
  %s11 = scalar_select 0, %s10, %s8
  loop: start=0, step=1, limit=8
  $region2: #{pointnet_feat.1} parent=0 // loop_pre_header
    _
  $region3: #{pointnet_feat.1} parent=0 // loop_header
    %s13 = sphi 0, %s17
    %p14 = scmp.ge.s32.totalorder %s13, 8
    %s20 = sphi 0, %s39
    %s21 = sphi 0, %s35
    %s22 = sphi 0, %s31
    %s23 = sphi 0, %s20
    %s24 = sphi 0, %s21
    %s25 = sphi 0, %s22
    %s26 = sphi 0, %s23
    %s27 = sphi 0, %s24
    %s28 = sphi 0, %s25
    %s44 = sphi 0, %s46
    %s47 = sphi 0, %s44
    %s48 = sphi 0, %s47
    %s64 = sphi 0, %s48
    %s68 = sphi 0, %s68
    %s70 = sphi 0, %s68
    %s71 = sphi 0, %s70
    %s85 = sphi 0, %s71
    %s89 = sphi 0, %s89
    %s91 = sphi 0, %s89
    %s92 = sphi 0, %s91
    %s106 = sphi 0, %s92
    %s110 = sphi 0, %s110
    %s112 = sphi 0, %s110
    %s113 = sphi 0, %s112
    %s127 = sphi 0, %s113
    %s131 = sphi 0, %s131
    %s133 = sphi 0, %s131
    %s134 = sphi 0, %s133
    %s148 = sphi 0, %s134
    %s154 = sphi 0, %s156
    %s157 = sphi 0, %s154
    %s158 = sphi 0, %s157
    %s174 = sphi 0, %s158
    %s180 = sphi 0, %s182
    %s183 = sphi 0, %s180
    %s184 = sphi 0, %s183
    %s200 = sphi 0, %s184
    %s208 = sphi 0, %s210
    %s211 = sphi 0, %s208
    %s212 = sphi 0, %s211
    %s228 = sphi 0, %s212
  $region4: #{pointnet_feat.1} parent=0 // loop_header_branch
    %16 = sbr.rel (%p14) target = $region8
  $region5: #{pointnet_feat.1} parent=0 // loop_body
    %s18 = ssub.s32 %s13, 1
    %s19 = ssub.s32 %s13, 2
    %s29 = sadd.s32 1, %s22
    %p30 = scmp.ge.s32.totalorder %s29, 3
    %s31 = scalar_select %p30, 0, %s29
    %s32 = sadd.s32 1, %s21
    %s33 = scalar_select %p30, %s32, %s21
    %p34 = scmp.ge.s32.totalorder %s33, 1
    %s35 = scalar_select %p34, 0, %s33
    %s36 = sadd.s32 1, %s20
    %s37 = scalar_select %p34, %s36, %s20
    %p38 = scmp.ge.s32.totalorder %s37, 2
    %s39 = scalar_select %p38, 0, %s37
    %s40 = ssub.s32 %s20, %s39
    %s41 = ssub.s32 %s22, %s31
    %s42 = sor.u32 %s40, %s41
    %p43 = scmp.eq.s32.totalorder %s42, 0
    %s45 = sadd.s32 %s44, 1
    %s46 = scalar_select %p43, %s44, %s45
    %p49 = pneg %p43
    %p50 = scmp.eq.s32.totalorder %s13, 5
    %p51 = por %p49, %p50
    %p52 = scmp.ne.s32.totalorder %s44, %s47
    %p53 = scmp.eq.s32.totalorder %s13, 0
    %p54 = por %p52, %p53
    %p55 = scmp.ne.s32.totalorder %s44, %s47
    %p56 = scmp.eq.s32.totalorder %s18, 5
    %p57 = por %p55, %p56
    %p58 = scmp.ne.s32.totalorder %s47, %s48
    %p59 = scmp.eq.s32.totalorder %s18, 0
    %p60 = por %p58, %p59
    %p61 = scmp.ne.s32.totalorder %s47, %s48
    %p62 = scmp.eq.s32.totalorder %s19, 5
    %p63 = por %p61, %p62
    %p65 = scmp.ne.s32.totalorder %s48, %s64
    %p66 = scmp.eq.s32.totalorder %s19, 0
    %p67 = por %p65, %p66
    %s69 = sadd.s32 %s68, 1
    %p72 = scmp.eq.s32.totalorder %s13, 5
    %p73 = scmp.ne.s32.totalorder %s68, %s70
    %p74 = scmp.eq.s32.totalorder %s13, 0
    %p75 = por %p73, %p74
    %p76 = scmp.ne.s32.totalorder %s68, %s70
    %p77 = scmp.eq.s32.totalorder %s18, 5
    %p78 = por %p76, %p77
    %p79 = scmp.ne.s32.totalorder %s70, %s71
    %p80 = scmp.eq.s32.totalorder %s18, 0
    %p81 = por %p79, %p80
    %p82 = scmp.ne.s32.totalorder %s70, %s71
    %p83 = scmp.eq.s32.totalorder %s19, 5
    %p84 = por %p82, %p83
    %p86 = scmp.ne.s32.totalorder %s71, %s85
    %p87 = scmp.eq.s32.totalorder %s19, 0
    %p88 = por %p86, %p87
    %s90 = sadd.s32 %s89, 1
    %p93 = scmp.eq.s32.totalorder %s13, 5
    %p94 = scmp.ne.s32.totalorder %s89, %s91
    %p95 = scmp.eq.s32.totalorder %s13, 0
    %p96 = por %p94, %p95
    %p97 = scmp.ne.s32.totalorder %s89, %s91
    %p98 = scmp.eq.s32.totalorder %s18, 5
    %p99 = por %p97, %p98
    %p100 = scmp.ne.s32.totalorder %s91, %s92
    %p101 = scmp.eq.s32.totalorder %s18, 0
    %p102 = por %p100, %p101
    %p103 = scmp.ne.s32.totalorder %s91, %s92
    %p104 = scmp.eq.s32.totalorder %s19, 5
    %p105 = por %p103, %p104
    %p107 = scmp.ne.s32.totalorder %s92, %s106
    %p108 = scmp.eq.s32.totalorder %s19, 0
    %p109 = por %p107, %p108
    %s111 = sadd.s32 %s110, 1
    %p114 = scmp.eq.s32.totalorder %s13, 5
    %p115 = scmp.ne.s32.totalorder %s110, %s112
    %p116 = scmp.eq.s32.totalorder %s13, 0
    %p117 = por %p115, %p116
    %p118 = scmp.ne.s32.totalorder %s110, %s112
    %p119 = scmp.eq.s32.totalorder %s18, 5
    %p120 = por %p118, %p119
    %p121 = scmp.ne.s32.totalorder %s112, %s113
    %p122 = scmp.eq.s32.totalorder %s18, 0
    %p123 = por %p121, %p122
    %p124 = scmp.ne.s32.totalorder %s112, %s113
    %p125 = scmp.eq.s32.totalorder %s19, 5
    %p126 = por %p124, %p125
    %p128 = scmp.ne.s32.totalorder %s113, %s127
    %p129 = scmp.eq.s32.totalorder %s19, 0
    %p130 = por %p128, %p129
    %s132 = sadd.s32 %s131, 1
    %p135 = scmp.eq.s32.totalorder %s13, 5
    %p136 = scmp.ne.s32.totalorder %s131, %s133
    %p137 = scmp.eq.s32.totalorder %s13, 0
    %p138 = por %p136, %p137
    %p139 = scmp.ne.s32.totalorder %s131, %s133
    %p140 = scmp.eq.s32.totalorder %s18, 5
    %p141 = por %p139, %p140
    %p142 = scmp.ne.s32.totalorder %s133, %s134
    %p143 = scmp.eq.s32.totalorder %s18, 0
    %p144 = por %p142, %p143
    %p145 = scmp.ne.s32.totalorder %s133, %s134
    %p146 = scmp.eq.s32.totalorder %s19, 5
    %p147 = por %p145, %p146
    %p149 = scmp.ne.s32.totalorder %s134, %s148
    %p150 = scmp.eq.s32.totalorder %s19, 0
    %p151 = por %p149, %p150
    %s152 = ssub.s32 %s21, %s35
    %p153 = scmp.eq.s32.totalorder %s152, 0
    %s155 = sadd.s32 %s154, 1
    %s156 = scalar_select %p153, %s154, %s155
    %p159 = pneg %p153
    %p160 = scmp.eq.s32.totalorder %s13, 5
    %p161 = por %p159, %p160
    %p162 = scmp.ne.s32.totalorder %s154, %s157
    %p163 = scmp.eq.s32.totalorder %s13, 0
    %p164 = por %p162, %p163
    %p165 = scmp.ne.s32.totalorder %s154, %s157
    %p166 = scmp.eq.s32.totalorder %s18, 5
    %p167 = por %p165, %p166
    %p168 = scmp.ne.s32.totalorder %s157, %s158
    %p169 = scmp.eq.s32.totalorder %s18, 0
    %p170 = por %p168, %p169
    %p171 = scmp.ne.s32.totalorder %s157, %s158
    %p172 = scmp.eq.s32.totalorder %s19, 5
    %p173 = por %p171, %p172
    %p175 = scmp.ne.s32.totalorder %s158, %s174
    %p176 = scmp.eq.s32.totalorder %s19, 0
    %p177 = por %p175, %p176
    %s178 = ssub.s32 %s21, %s35
    %p179 = scmp.eq.s32.totalorder %s178, 0
    %s181 = sadd.s32 %s180, 1
    %s182 = scalar_select %p179, %s180, %s181
    %p185 = pneg %p179
    %p186 = scmp.eq.s32.totalorder %s13, 5
    %p187 = por %p185, %p186
    %p188 = scmp.ne.s32.totalorder %s180, %s183
    %p189 = scmp.eq.s32.totalorder %s13, 0
    %p190 = por %p188, %p189
    %p191 = scmp.ne.s32.totalorder %s180, %s183
    %p192 = scmp.eq.s32.totalorder %s18, 5
    %p193 = por %p191, %p192
    %p194 = scmp.ne.s32.totalorder %s183, %s184
    %p195 = scmp.eq.s32.totalorder %s18, 0
    %p196 = por %p194, %p195
    %p197 = scmp.ne.s32.totalorder %s183, %s184
    %p198 = scmp.eq.s32.totalorder %s19, 5
    %p199 = por %p197, %p198
    %p201 = scmp.ne.s32.totalorder %s184, %s200
    %p202 = scmp.eq.s32.totalorder %s19, 0
    %p203 = por %p201, %p202
    %s204 = ssub.s32 %s20, %s39
    %s205 = ssub.s32 %s21, %s35
    %s206 = sor.u32 %s204, %s205
    %p207 = scmp.eq.s32.totalorder %s206, 0
    %s209 = sadd.s32 %s208, 1
    %s210 = scalar_select %p207, %s208, %s209
    %p213 = pneg %p207
    %p214 = scmp.eq.s32.totalorder %s13, 5
    %p215 = por %p213, %p214
    %p216 = scmp.ne.s32.totalorder %s208, %s211
    %p217 = scmp.eq.s32.totalorder %s13, 0
    %p218 = por %p216, %p217
    %p219 = scmp.ne.s32.totalorder %s208, %s211
    %p220 = scmp.eq.s32.totalorder %s18, 5
    %p221 = por %p219, %p220
    %p222 = scmp.ne.s32.totalorder %s211, %s212
    %p223 = scmp.eq.s32.totalorder %s18, 0
    %p224 = por %p222, %p223
    %p225 = scmp.ne.s32.totalorder %s211, %s212
    %p226 = scmp.eq.s32.totalorder %s19, 5
    %p227 = por %p225, %p226
    %p229 = scmp.ne.s32.totalorder %s212, %s228
    %p230 = scmp.eq.s32.totalorder %s19, 0
    %p231 = por %p229, %p230
    %p232 = scmp.le.s32.totalorder 1, %s13
    %p233 = scmp.lt.s32.totalorder %s13, 7
    %p234 = pnand %p232, %p233
    %p235 = pneg %p234
    // Predicated region
    $region9: #{pointnet_feat.1} parent=5 // pred_check
      _
    $region10: #{pointnet_feat.1} parent=5 // pred_check_branch
      %237 = sbr.rel (%p234) target = $region12
    $region11: #{pointnet_feat.1} parent=5 // pred_region
      %s238 = ssub.s32 %s13, 1
      // Predicated region
      $region13: #{pointnet_feat.1} parent=11 // pred_check
        %p239 = pneg %p81
      $region14: #{pointnet_feat.1} parent=11 // pred_check_branch
        %241 = sbr.rel (%p239) target = $region16
      $region15: #{pointnet_feat.1} parent=11 // pred_region
        _
      $region16: #{pointnet_feat.1} parent=11 // pred_fallthru
        _
      // Predicated region
      $region17: #{pointnet_feat.1} parent=11 // pred_check
        %p242 = pneg %p102
      $region18: #{pointnet_feat.1} parent=11 // pred_check_branch
        %244 = sbr.rel (%p242) target = $region20
      $region19: #{pointnet_feat.1} parent=11 // pred_region
        _
      $region20: #{pointnet_feat.1} parent=11 // pred_fallthru
        _
      // Predicated region
      $region21: #{pointnet_feat.1} parent=11 // pred_check
        %p245 = pneg %p123
      $region22: #{pointnet_feat.1} parent=11 // pred_check_branch
        %247 = sbr.rel (%p245) target = $region24
      $region23: #{pointnet_feat.1} parent=11 // pred_region
        _
      $region24: #{pointnet_feat.1} parent=11 // pred_fallthru
        _
      // Predicated region
      $region25: #{pointnet_feat.1} parent=11 // pred_check
        %p248 = pneg %p144
      $region26: #{pointnet_feat.1} parent=11 // pred_check_branch
        %250 = sbr.rel (%p248) target = $region28
      $region27: #{pointnet_feat.1} parent=11 // pred_region
        _
      $region28: #{pointnet_feat.1} parent=11 // pred_fallthru
        _
      // Predicated region
      $region29: #{pointnet_feat.1} parent=11 // pred_check
        %p251 = pneg %p170
      $region30: #{pointnet_feat.1} parent=11 // pred_check_branch
        %253 = sbr.rel (%p251) target = $region32
      $region31: #{pointnet_feat.1} parent=11 // pred_region
        %s254 = smul.u32 8, %s24
        %p255 = scmp.lt.s32.totalorder %s254, 7
        %s256 = scalar_select %p255, %s254, 7
        %s257 = smul.addr %s256, 4
        %s258 = scalar_lea.vmem %s5, %s257
        %s259 = smul.u32 8, %s24
      $region32: #{pointnet_feat.1} parent=11 // pred_fallthru
        _
      // Predicated region
      $region33: #{pointnet_feat.1} parent=11 // pred_check
        %p260 = pneg %p196
      $region34: #{pointnet_feat.1} parent=11 // pred_check_branch
        %262 = sbr.rel (%p260) target = $region36
      $region35: #{pointnet_feat.1} parent=11 // pred_region
        %s263 = smul.u32 8, %s24
        %p264 = scmp.lt.s32.totalorder %s263, 7
        %s265 = scalar_select %p264, %s263, 7
        %s266 = scalar_lea.vmem %s6, %s265
        %s267 = smul.u32 8, %s24
      $region36: #{pointnet_feat.1} parent=11 // pred_fallthru
        _
    $region12: #{pointnet_feat.1} parent=5 // pred_fallthru
      _
    %p268 = scmp.lt.s32.totalorder %s13, 6
    // Predicated region
    $region37: #{pointnet_feat.1} parent=5 // pred_check
      %p269 = pneg %p268
    $region38: #{pointnet_feat.1} parent=5 // pred_check_branch
      %271 = sbr.rel (%p269) target = $region40
    $region39: #{pointnet_feat.1} parent=5 // pred_region
      // Predicated region
      $region41: #{pointnet_feat.1} parent=39 // pred_check
        %p272 = pneg %p54
      $region42: #{pointnet_feat.1} parent=39 // pred_check_branch
        %274 = sbr.rel (%p272) target = $region44
      $region43: #{pointnet_feat.1} parent=39 // pred_region
        %s275 = smul.u32 2, %s22
        %p276 = scmp.lt.s32.totalorder %s20, 1
        %s277 = scalar_select %p276, %s20, 1
        %p278 = scmp.lt.s32.totalorder %s275, 5
        %s279 = scalar_select %p278, %s275, 5
        %s280 = smul.addr %s277, 6
        %s281 = sadd.s32 %s279, %s280
        %s282 = smul.addr %s281, 4
        %s283 = scalar_lea.vmem %s0, %s282
        %s284 = smul.u32 2, %s22
      $region44: #{pointnet_feat.1} parent=39 // pred_fallthru
        _
    $region40: #{pointnet_feat.1} parent=5 // pred_fallthru
      _
    %p285 = scmp.le.s32.totalorder 1, %s13
    %p286 = scmp.lt.s32.totalorder %s13, 7
    %p287 = pnand %p285, %p286
    %p288 = pneg %p287
    // Predicated region
    $region45: #{pointnet_feat.1} parent=5 // pred_check
      _
    $region46: #{pointnet_feat.1} parent=5 // pred_check_branch
      %290 = sbr.rel (%p287) target = $region48
    $region47: #{pointnet_feat.1} parent=5 // pred_region
      %s291 = ssub.s32 %s13, 1
      %s292 = smul.u32 2, %s25
      %p293 = scmp.lt.s32.totalorder %s23, 1
      %s294 = scalar_select %p293, %s23, 1
      %p295 = scmp.lt.s32.totalorder %s292, 5
      %s296 = scalar_select %p295, %s292, 5
      %s297 = smul.addr %s294, 6
      %s298 = sadd.s32 %s296, %s297
      %s299 = smul.addr %s298, 4
      %s300 = scalar_lea.vmem %s0, %s299
      %p301 = pneg %p60
      %p302 = pneg %p57
      %p303 = pneg %p81
      %p304 = pneg %p78
      %p305 = pneg %p102
      %p306 = pneg %p99
      %p307 = pneg %p123
      %p308 = pneg %p120
      %p309 = pneg %p144
      %p310 = pneg %p141
      %s311 = smul.u32 8, %s24
      %p312 = scmp.lt.s32.totalorder %s311, 7
      %s313 = scalar_select %p312, %s311, 7
      %s314 = smul.addr %s313, 4
      %s315 = scalar_lea.vmem %s5, %s314
      %p316 = pneg %p170
      %p317 = pneg %p167
      %s318 = smul.u32 8, %s24
      %p319 = scmp.lt.s32.totalorder %s318, 7
      %s320 = scalar_select %p319, %s318, 7
      %s321 = scalar_lea.vmem %s6, %s320
      %p322 = pneg %p196
      %p323 = pneg %p193
      %p324 = pneg %p224
      %p325 = pneg %p221
      %s326 = smul.u32 8, %s24
      %p327 = scmp.lt.s32.totalorder %s23, 1
      %s328 = scalar_select %p327, %s23, 1
      %p329 = scmp.lt.s32.totalorder %s326, 7
      %s330 = scalar_select %p329, %s326, 7
      %s331 = smul.addr %s328, 8
      %s332 = sadd.s32 %s330, %s331
      %s333 = scalar_lea.vmem %s7, %s332
      %s334 = smul.u32 2, %s25
      %p335 = scmp.lt.s32.totalorder %s23, 1
      %s336 = scalar_select %p335, %s23, 1
      %p337 = scmp.lt.s32.totalorder %s334, 5
      %s338 = scalar_select %p337, %s334, 5
      %s339 = smul.addr %s336, 6
      %s340 = sadd.s32 %s338, %s339
      %s341 = smul.addr %s340, 4
      %s342 = scalar_lea.vmem %s0, %s341
      %s343 = smul.u32 2, %s25
      %s344 = smul.u32 8, %s24
      %p345 = scmp.lt.s32.totalorder %s344, 7
      %s346 = scalar_select %p345, %s344, 7
      %s347 = smul.addr %s346, 4
      %s348 = scalar_lea.vmem %s5, %s347
      %s349 = smul.u32 8, %s24
      %s350 = smul.u32 8, %s24
      %p351 = scmp.lt.s32.totalorder %s350, 7
      %s352 = scalar_select %p351, %s350, 7
      %s353 = scalar_lea.vmem %s6, %s352
      %s354 = smul.u32 8, %s24
      %s355 = smul.u32 8, %s24
      %p356 = scmp.lt.s32.totalorder %s23, 1
      %s357 = scalar_select %p356, %s23, 1
      %p358 = scmp.lt.s32.totalorder %s355, 7
      %s359 = scalar_select %p358, %s355, 7
      %s360 = smul.addr %s357, 8
      %s361 = sadd.s32 %s359, %s360
      %s362 = scalar_lea.vmem %s7, %s361
      %s363 = smul.u32 8, %s24
      %p365 = scmp.eq.s32.totalorder %s25, 0
      // Predicated region
      $region49: #{pointnet_feat.1} parent=47 // pred_check
        %p366 = pneg %p365
      $region50: #{pointnet_feat.1} parent=47 // pred_check_branch
        %368 = sbr.rel (%p366) target = $region52
      $region51: #{pointnet_feat.1} parent=47 // pred_region
        %369 = vst [vmem:[%s362] sm:$0xff] -inf
      $region52: #{pointnet_feat.1} parent=47 // pred_fallthru
        _
      %v370 = vld [vmem:[%s342] sm:$0xf]
      %v371 = vld [vmem:[%s342 + $0x4] sm:$0xf]
      %v372 = vld [vmem:[%s1] sm:$0x3]
      %v373 = vld [vmem:[%s2] sm:$0x1]
      %v375 = vlaneseq
      %v376 = vshrl.u32 %v375, 7
      %v377 = vsub.s32 0, %v376
      %v378 = vrot.slane %v373, %v377
      %v382 = vunpack.c.l.b16 %v370
      %v383 = vunpack.c.l.b16 %v371
      %v384 = vpack.c.b16 %v383, %v382
      %vm385 = vcmask 31744
      %v387 = vsel %vm385, %v384, 0
      %vm389 = vcmask 1041408
      %v391 = vsel %vm389, %v372, 0
      %393 = vmatprep.subr.bf16.mxu0 0
      %394 = vmatpush1.bf16.msra.mxu0 0
      %395 = vmatprep.subr.bf16.mxu0 0
      %396 = vmatpush1.bf16.msra.mxu0 0
      %397 = vmatprep.subr.bf16.mxu0 0
      %398 = vmatpush1.bf16.msra.mxu0 0
      %399 = vmatprep.subr.bf16.mxu0 0
      %400 = vmatpush1.bf16.msra.mxu0 0
      %401 = vmatprep.subr.bf16.mxu0 0
      %402 = vmatpush1.bf16.msra.mxu0 0
      %403 = vmatprep.subr.bf16.mxu0 0
      %404 = vmatpush1.bf16.msra.mxu0 0
      %405 = vmatprep.subr.bf16.mxu0 0
      %406 = vmatpush1.bf16.msra.mxu0 0
      %407 = vmatprep.subr.bf16.mxu0 0
      %408 = vmatpush1.bf16.msra.mxu0 %v391
      %409 = vmatprep.subr.bf16.mxu0 0
      %410 = vmatpush2.bf16.msra.mxu0 0
      %411 = vmatprep.subr.bf16.mxu0 0
      %412 = vmatpush2.bf16.msra.mxu0 0
      %413 = vmatprep.subr.bf16.mxu0 0
      %414 = vmatpush2.bf16.msra.mxu0 0
      %415 = vmatprep.subr.bf16.mxu0 0
      %416 = vmatpush2.bf16.msra.mxu0 0
      %417 = vmatprep.subr.bf16.mxu0 0
      %418 = vmatpush2.bf16.msra.mxu0 0
      %419 = vmatprep.subr.bf16.mxu0 0
      %420 = vmatpush2.bf16.msra.mxu0 0
      %421 = vmatprep.subr.bf16.mxu0 0
      %422 = vmatpush2.bf16.msra.mxu0 0
      %423 = vmatprep.subr.bf16.mxu0 0
      %424 = vmatpush2.bf16.msra.mxu0 0
      %425 = vmatprep.mubr.bf16.mxu0 0
      %426 = vmatmul.mubr.bf16.gmra.mxu0 %v387
      %v427 = vpop.f32.mrf.mxu0
      %v428 = vadd.f32 %v378, %v427
      %v429 = vpop.f32.mrf.mxu0
      %v430 = vpop.f32.mrf.mxu0
      %v431 = vadd.f32 %v378, %v430
      %v432 = vpop.f32.mrf.mxu0
      %433 = vdwg.mxu0
      %v434 = vmax.f32 %v428, 0.0
      %v435 = vmax.f32 %v431, 0.0
      %v436 = vpack.c.bf16 %v435, %v434
      %v437 = vld [vmem:[%s3] sm:$0xf]
      %v438 = vld [vmem:[%s3 + $0x4] sm:$0xf]
      %v439 = vld [vmem:[%s3 + $0x8] sm:$0xf]
      %v440 = vld [vmem:[%s3 + $0xc] sm:$0xf]
      %v441 = vld [vmem:[%s3 + $0x10] sm:$0xf]
      %v442 = vld [vmem:[%s3 + $0x14] sm:$0xf]
      %v443 = vld [vmem:[%s3 + $0x18] sm:$0xf]
      %v444 = vld [vmem:[%s3 + $0x1c] sm:$0xf]
      %v445 = vld [vmem:[%s4] sm:$0x1]
      %v447 = vlaneseq
      %v448 = vshrl.u32 %v447, 7
      %v449 = vsub.s32 0, %v448
      %v450 = vrot.slane %v445, %v449
      %v460 = vunpack.c.l.b16 %v437
      %v461 = vunpack.c.l.b16 %v438
      %v462 = vunpack.c.l.b16 %v439
      %v463 = vunpack.c.l.b16 %v440
      %v464 = vunpack.c.l.b16 %v441
      %v465 = vunpack.c.l.b16 %v442
      %v466 = vunpack.c.l.b16 %v443
      %v467 = vunpack.c.l.b16 %v444
      %v468 = vpack.c.b16 %v461, %v460
      %v469 = vpack.c.b16 %v463, %v462
      %v470 = vpack.c.b16 %v465, %v464
      %v471 = vpack.c.b16 %v467, %v466
      %vm476 = vcmask 523264
      %v478 = vsel %vm476, %v436, 0
      %480 = vmatprep.subr.bf16.mxu0 0
      %481 = vmatpush1.bf16.msra.mxu0 0
      %482 = vmatprep.subr.bf16.mxu0 0
      %483 = vmatpush1.bf16.msra.mxu0 0
      %484 = vmatprep.subr.bf16.mxu0 0
      %485 = vmatpush1.bf16.msra.mxu0 0
      %486 = vmatprep.subr.bf16.mxu0 0
      %487 = vmatpush1.bf16.msra.mxu0 0
      %488 = vmatprep.subr.bf16.mxu0 0
      %489 = vmatpush1.bf16.msra.mxu0 %v471
      %490 = vmatprep.subr.bf16.mxu0 0
      %491 = vmatpush1.bf16.msra.mxu0 %v470
      %492 = vmatprep.subr.bf16.mxu0 0
      %493 = vmatpush1.bf16.msra.mxu0 %v469
      %494 = vmatprep.subr.bf16.mxu0 0
      %495 = vmatpush1.bf16.msra.mxu0 %v468
      %496 = vmatprep.subr.bf16.mxu0 0
      %497 = vmatpush2.bf16.msra.mxu0 0
      %498 = vmatprep.subr.bf16.mxu0 0
      %499 = vmatpush2.bf16.msra.mxu0 0
      %500 = vmatprep.subr.bf16.mxu0 0
      %501 = vmatpush2.bf16.msra.mxu0 0
      %502 = vmatprep.subr.bf16.mxu0 0
      %503 = vmatpush2.bf16.msra.mxu0 0
      %504 = vmatprep.subr.bf16.mxu0 0
      %505 = vmatpush2.bf16.msra.mxu0 0
      %506 = vmatprep.subr.bf16.mxu0 0
      %507 = vmatpush2.bf16.msra.mxu0 0
      %508 = vmatprep.subr.bf16.mxu0 0
      %509 = vmatpush2.bf16.msra.mxu0 0
      %510 = vmatprep.subr.bf16.mxu0 0
      %511 = vmatpush2.bf16.msra.mxu0 0
      %512 = vmatprep.mubr.bf16.mxu0 0
      %513 = vmatmul.mubr.bf16.gmra.mxu0 %v478
      %v514 = vpop.f32.mrf.mxu0
      %v515 = vadd.f32 %v450, %v514
      %v516 = vpop.f32.mrf.mxu0
      %v517 = vpop.f32.mrf.mxu0
      %v518 = vadd.f32 %v450, %v517
      %v519 = vpop.f32.mrf.mxu0
      %520 = vdwg.mxu0
      %v521 = vmax.f32 %v515, 0.0
      %v522 = vmax.f32 %v518, 0.0
      %v523 = vpack.c.bf16 %v522, %v521
      %p524 = scmp.lt.s32.totalorder %s25, 2
      // Predicated region
      $region53: #{pointnet_feat.1} parent=47 // pred_check
        %p525 = pneg %p524
      $region54: #{pointnet_feat.1} parent=47 // pred_check_branch
        %527 = sbr.rel (%p525) target = $region56
      $region55: #{pointnet_feat.1} parent=47 // pred_region
        %v528 = vld [vmem:[%s348] sm:$0xff]
        %v529 = vld [vmem:[%s348 + $0x20] sm:$0xff]
        %v530 = vld [vmem:[%s348 + $0x40] sm:$0xff]
        %v531 = vld [vmem:[%s348 + $0x60] sm:$0xff]
        %v532 = vld [vmem:[%s348 + $0x80] sm:$0xff]
        %v533 = vld [vmem:[%s348 + $0xa0] sm:$0xff]
        %v534 = vld [vmem:[%s348 + $0xc0] sm:$0xff]
        %v535 = vld [vmem:[%s348 + $0xe0] sm:$0xff]
        %v536 = vld [vmem:[%s348 + $0x100] sm:$0xff]
        %v537 = vld [vmem:[%s348 + $0x120] sm:$0xff]
        %v538 = vld [vmem:[%s348 + $0x140] sm:$0xff]
        %v539 = vld [vmem:[%s348 + $0x160] sm:$0xff]
        %v540 = vld [vmem:[%s348 + $0x180] sm:$0xff]
        %v541 = vld [vmem:[%s348 + $0x1a0] sm:$0xff]
        %v542 = vld [vmem:[%s348 + $0x1c0] sm:$0xff]
        %v543 = vld [vmem:[%s348 + $0x1e0] sm:$0xff]
        %v560 = vunpack.c.l.b16 %v528
        %v561 = vunpack.c.h.b16 %v528
        %v562 = vunpack.c.l.b16 %v529
        %v563 = vunpack.c.h.b16 %v529
        %v564 = vunpack.c.l.b16 %v530
        %v565 = vunpack.c.h.b16 %v530
        %v566 = vunpack.c.l.b16 %v531
        %v567 = vunpack.c.h.b16 %v531
        %v568 = vunpack.c.l.b16 %v532
        %v569 = vunpack.c.h.b16 %v532
        %v570 = vunpack.c.l.b16 %v533
        %v571 = vunpack.c.h.b16 %v533
        %v572 = vunpack.c.l.b16 %v534
        %v573 = vunpack.c.h.b16 %v534
        %v574 = vunpack.c.l.b16 %v535
        %v575 = vunpack.c.h.b16 %v535
        %v576 = vunpack.c.l.b16 %v536
        %v577 = vunpack.c.h.b16 %v536
        %v578 = vunpack.c.l.b16 %v537
        %v579 = vunpack.c.h.b16 %v537
        %v580 = vunpack.c.l.b16 %v538
        %v581 = vunpack.c.h.b16 %v538
        %v582 = vunpack.c.l.b16 %v539
        %v583 = vunpack.c.h.b16 %v539
        %v584 = vunpack.c.l.b16 %v540
        %v585 = vunpack.c.h.b16 %v540
        %v586 = vunpack.c.l.b16 %v541
        %v587 = vunpack.c.h.b16 %v541
        %v588 = vunpack.c.l.b16 %v542
        %v589 = vunpack.c.h.b16 %v542
        %v590 = vunpack.c.l.b16 %v543
        %v591 = vunpack.c.h.b16 %v543
        %v592 = vpack.c.b16 %v562, %v560
        %v593 = vpack.c.b16 %v563, %v561
        %v594 = vpack.c.b16 %v566, %v564
        %v595 = vpack.c.b16 %v567, %v565
        %v596 = vpack.c.b16 %v570, %v568
        %v597 = vpack.c.b16 %v571, %v569
        %v598 = vpack.c.b16 %v574, %v572
        %v599 = vpack.c.b16 %v575, %v573
        %v600 = vpack.c.b16 %v578, %v576
        %v601 = vpack.c.b16 %v579, %v577
        %v602 = vpack.c.b16 %v582, %v580
        %v603 = vpack.c.b16 %v583, %v581
        %v604 = vpack.c.b16 %v586, %v584
        %v605 = vpack.c.b16 %v587, %v585
        %v606 = vpack.c.b16 %v590, %v588
        %v607 = vpack.c.b16 %v591, %v589
        %624 = vmatprep.subr.bf16.mxu0 %v607
        %625 = vmatpush1.bf16.msra.mxu0 %v606
        %626 = vmatprep.subr.bf16.mxu0 %v605
        %627 = vmatpush1.bf16.msra.mxu0 %v604
        %628 = vmatprep.subr.bf16.mxu0 %v603
        %629 = vmatpush1.bf16.msra.mxu0 %v602
        %630 = vmatprep.subr.bf16.mxu0 %v601
        %631 = vmatpush1.bf16.msra.mxu0 %v600
        %632 = vmatprep.subr.bf16.mxu0 %v599
        %633 = vmatpush1.bf16.msra.mxu0 %v598
        %634 = vmatprep.subr.bf16.mxu0 %v597
        %635 = vmatpush1.bf16.msra.mxu0 %v596
        %636 = vmatprep.subr.bf16.mxu0 %v595
        %637 = vmatpush1.bf16.msra.mxu0 %v594
        %638 = vmatprep.subr.bf16.mxu0 %v593
        %639 = vmatpush1.bf16.msra.mxu0 %v592
        %640 = vmatprep.subr.bf16.mxu0 0
        %641 = vmatpush2.bf16.msra.mxu0 0
        %642 = vmatprep.subr.bf16.mxu0 0
        %643 = vmatpush2.bf16.msra.mxu0 0
        %644 = vmatprep.subr.bf16.mxu0 0
        %645 = vmatpush2.bf16.msra.mxu0 0
        %646 = vmatprep.subr.bf16.mxu0 0
        %647 = vmatpush2.bf16.msra.mxu0 0
        %648 = vmatprep.subr.bf16.mxu0 0
        %649 = vmatpush2.bf16.msra.mxu0 0
        %650 = vmatprep.subr.bf16.mxu0 0
        %651 = vmatpush2.bf16.msra.mxu0 0
        %652 = vmatprep.subr.bf16.mxu0 0
        %653 = vmatpush2.bf16.msra.mxu0 0
        %654 = vmatprep.subr.bf16.mxu0 0
        %655 = vmatpush2.bf16.msra.mxu0 0
        %656 = vmatprep.mubr.bf16.mxu0 0
        %657 = vmatmul.mubr.bf16.gmra.mxu0 %v523
        %v658 = vpop.f32.mrf.mxu0
        %v659 = vadd.f32 0.0, %v658
        %v660 = vpop.f32.mrf.mxu0
        %v661 = vadd.f32 0.0, %v660
        %v662 = vpop.f32.mrf.mxu0
        %v663 = vadd.f32 0.0, %v662
        %v664 = vpop.f32.mrf.mxu0
        %v665 = vadd.f32 0.0, %v664
        %666 = vdwg.mxu0
        %v667 = vmax.f32 %v659, %v663
        %v668 = vrot.slane %v667, 4
        %v669 = vmax.f32 %v667, %v668
        %v670 = vrot.slane %v669, 2
        %v671 = vmax.f32 %v669, %v670
        %v672 = vrot.slane %v671, 1
        %v673 = vmax.f32 %v671, %v672
        %v674 = vmax.f32 %v661, %v665
        %v675 = vrot.slane %v674, 4
        %v676 = vmax.f32 %v674, %v675
        %v677 = vrot.slane %v676, 2
        %v678 = vmax.f32 %v676, %v677
        %v679 = vrot.slane %v678, 1
        %v680 = vmax.f32 %v678, %v679
        %v681 = vld [vmem:[%s362] sm:$0x3]
        %v684 = vcombine.low %v673, %v680
        %v686 = vunpack.c.l.s4 1966171168
        %v687 = vunpack.c.0.s8 %v686
        %v688 = vlaneseq
        %v689 = vshrl.u32 %v688, 7
        %v690 = vsub.s32 %v687, %v689
        %v691 = vrot.slane %v684, %v690
        %v693 = vunpack.c.l.s4 1966171168
        %v694 = vunpack.c.0.s8 %v693
        %v695 = vlaneseq
        %v696 = vshrl.u32 %v695, 7
        %v697 = vsub.s32 %v694, %v696
        %v698 = vrot.slane %v691, %v697
        %v700 = vmax.f32 %v681, %v698
        %v701 = vlaneseq
        %vm702 = vcmp.ge.s32.totalorder %v701, 0
        %vm703 = vcmp.lt.s32.totalorder %v701, 256
        %vm704 = vmand %vm702, %vm703
        %705 = vst.msk [vmem:[%s362] sm:$0x3] %vm704, %v700
        %v706 = vld [vmem:[%s348 + $0x8] sm:$0xff]
        %v707 = vld [vmem:[%s348 + $0x28] sm:$0xff]
        %v708 = vld [vmem:[%s348 + $0x48] sm:$0xff]
        %v709 = vld [vmem:[%s348 + $0x68] sm:$0xff]
        %v710 = vld [vmem:[%s348 + $0x88] sm:$0xff]
        %v711 = vld [vmem:[%s348 + $0xa8] sm:$0xff]
        %v712 = vld [vmem:[%s348 + $0xc8] sm:$0xff]
        %v713 = vld [vmem:[%s348 + $0xe8] sm:$0xff]
        %v714 = vld [vmem:[%s348 + $0x108] sm:$0xff]
        %v715 = vld [vmem:[%s348 + $0x128] sm:$0xff]
        %v716 = vld [vmem:[%s348 + $0x148] sm:$0xff]
        %v717 = vld [vmem:[%s348 + $0x168] sm:$0xff]
        %v718 = vld [vmem:[%s348 + $0x188] sm:$0xff]
        %v719 = vld [vmem:[%s348 + $0x1a8] sm:$0xff]
        %v720 = vld [vmem:[%s348 + $0x1c8] sm:$0xff]
        %v721 = vld [vmem:[%s348 + $0x1e8] sm:$0xff]
        %v738 = vunpack.c.l.b16 %v706
        %v739 = vunpack.c.h.b16 %v706
        %v740 = vunpack.c.l.b16 %v707
        %v741 = vunpack.c.h.b16 %v707
        %v742 = vunpack.c.l.b16 %v708
        %v743 = vunpack.c.h.b16 %v708
        %v744 = vunpack.c.l.b16 %v709
        %v745 = vunpack.c.h.b16 %v709
        %v746 = vunpack.c.l.b16 %v710
        %v747 = vunpack.c.h.b16 %v710
        %v748 = vunpack.c.l.b16 %v711
        %v749 = vunpack.c.h.b16 %v711
        %v750 = vunpack.c.l.b16 %v712
        %v751 = vunpack.c.h.b16 %v712
        %v752 = vunpack.c.l.b16 %v713
        %v753 = vunpack.c.h.b16 %v713
        %v754 = vunpack.c.l.b16 %v714
        %v755 = vunpack.c.h.b16 %v714
        %v756 = vunpack.c.l.b16 %v715
        %v757 = vunpack.c.h.b16 %v715
        %v758 = vunpack.c.l.b16 %v716
        %v759 = vunpack.c.h.b16 %v716
        %v760 = vunpack.c.l.b16 %v717
        %v761 = vunpack.c.h.b16 %v717
        %v762 = vunpack.c.l.b16 %v718
        %v763 = vunpack.c.h.b16 %v718
        %v764 = vunpack.c.l.b16 %v719
        %v765 = vunpack.c.h.b16 %v719
        %v766 = vunpack.c.l.b16 %v720
        %v767 = vunpack.c.h.b16 %v720
        %v768 = vunpack.c.l.b16 %v721
        %v769 = vunpack.c.h.b16 %v721
        %v770 = vpack.c.b16 %v740, %v738
        %v771 = vpack.c.b16 %v741, %v739
        %v772 = vpack.c.b16 %v744, %v742
        %v773 = vpack.c.b16 %v745, %v743
        %v774 = vpack.c.b16 %v748, %v746
        %v775 = vpack.c.b16 %v749, %v747
        %v776 = vpack.c.b16 %v752, %v750
        %v777 = vpack.c.b16 %v753, %v751
        %v778 = vpack.c.b16 %v756, %v754
        %v779 = vpack.c.b16 %v757, %v755
        %v780 = vpack.c.b16 %v760, %v758
        %v781 = vpack.c.b16 %v761, %v759
        %v782 = vpack.c.b16 %v764, %v762
        %v783 = vpack.c.b16 %v765, %v763
        %v784 = vpack.c.b16 %v768, %v766
        %v785 = vpack.c.b16 %v769, %v767
        %802 = vmatprep.subr.bf16.mxu0 %v785
        %803 = vmatpush1.bf16.msra.mxu0 %v784
        %804 = vmatprep.subr.bf16.mxu0 %v783
        %805 = vmatpush1.bf16.msra.mxu0 %v782
        %806 = vmatprep.subr.bf16.mxu0 %v781
        %807 = vmatpush1.bf16.msra.mxu0 %v780
        %808 = vmatprep.subr.bf16.mxu0 %v779
        %809 = vmatpush1.bf16.msra.mxu0 %v778
        %810 = vmatprep.subr.bf16.mxu0 %v777
        %811 = vmatpush1.bf16.msra.mxu0 %v776
        %812 = vmatprep.subr.bf16.mxu0 %v775
        %813 = vmatpush1.bf16.msra.mxu0 %v774
        %814 = vmatprep.subr.bf16.mxu0 %v773
        %815 = vmatpush1.bf16.msra.mxu0 %v772
        %816 = vmatprep.subr.bf16.mxu0 %v771
        %817 = vmatpush1.bf16.msra.mxu0 %v770
        %818 = vmatprep.subr.bf16.mxu0 0
        %819 = vmatpush2.bf16.msra.mxu0 0
        %820 = vmatprep.subr.bf16.mxu0 0
        %821 = vmatpush2.bf16.msra.mxu0 0
        %822 = vmatprep.subr.bf16.mxu0 0
        %823 = vmatpush2.bf16.msra.mxu0 0
        %824 = vmatprep.subr.bf16.mxu0 0
        %825 = vmatpush2.bf16.msra.mxu0 0
        %826 = vmatprep.subr.bf16.mxu0 0
        %827 = vmatpush2.bf16.msra.mxu0 0
        %828 = vmatprep.subr.bf16.mxu0 0
        %829 = vmatpush2.bf16.msra.mxu0 0
        %830 = vmatprep.subr.bf16.mxu0 0
        %831 = vmatpush2.bf16.msra.mxu0 0
        %832 = vmatprep.subr.bf16.mxu0 0
        %833 = vmatpush2.bf16.msra.mxu0 0
        %834 = vmatprep.mubr.bf16.mxu0 0
        %835 = vmatmul.mubr.bf16.gmra.mxu0 %v523
        %v836 = vpop.f32.mrf.mxu0
        %v837 = vadd.f32 0.0, %v836
        %v838 = vpop.f32.mrf.mxu0
        %v839 = vadd.f32 0.0, %v838
        %v840 = vpop.f32.mrf.mxu0
        %v841 = vadd.f32 0.0, %v840
        %v842 = vpop.f32.mrf.mxu0
        %v843 = vadd.f32 0.0, %v842
        %844 = vdwg.mxu0
        %v845 = vmax.f32 %v837, %v841
        %v846 = vrot.slane %v845, 4
        %v847 = vmax.f32 %v845, %v846
        %v848 = vrot.slane %v847, 2
        %v849 = vmax.f32 %v847, %v848
        %v850 = vrot.slane %v849, 1
        %v851 = vmax.f32 %v849, %v850
        %v852 = vmax.f32 %v839, %v843
        %v853 = vrot.slane %v852, 4
        %v854 = vmax.f32 %v852, %v853
        %v855 = vrot.slane %v854, 2
        %v856 = vmax.f32 %v854, %v855
        %v857 = vrot.slane %v856, 1
        %v858 = vmax.f32 %v856, %v857
        %v859 = vld [vmem:[%s362 + $0x2] sm:$0x3]
        %v862 = vcombine.low %v851, %v858
        %v864 = vunpack.c.l.s4 1966171168
        %v865 = vunpack.c.0.s8 %v864
        %v866 = vlaneseq
        %v867 = vshrl.u32 %v866, 7
        %v868 = vsub.s32 %v865, %v867
        %v869 = vrot.slane %v862, %v868
        %v871 = vunpack.c.l.s4 1966171168
        %v872 = vunpack.c.0.s8 %v871
        %v873 = vlaneseq
        %v874 = vshrl.u32 %v873, 7
        %v875 = vsub.s32 %v872, %v874
        %v876 = vrot.slane %v869, %v875
        %v878 = vmax.f32 %v859, %v876
        %879 = vst.msk [vmem:[%s362 + $0x2] sm:$0x3] %vm704, %v878
        %v880 = vld [vmem:[%s348 + $0x10] sm:$0xff]
        %v881 = vld [vmem:[%s348 + $0x30] sm:$0xff]
        %v882 = vld [vmem:[%s348 + $0x50] sm:$0xff]
        %v883 = vld [vmem:[%s348 + $0x70] sm:$0xff]
        %v884 = vld [vmem:[%s348 + $0x90] sm:$0xff]
        %v885 = vld [vmem:[%s348 + $0xb0] sm:$0xff]
        %v886 = vld [vmem:[%s348 + $0xd0] sm:$0xff]
        %v887 = vld [vmem:[%s348 + $0xf0] sm:$0xff]
        %v888 = vld [vmem:[%s348 + $0x110] sm:$0xff]
        %v889 = vld [vmem:[%s348 + $0x130] sm:$0xff]
        %v890 = vld [vmem:[%s348 + $0x150] sm:$0xff]
        %v891 = vld [vmem:[%s348 + $0x170] sm:$0xff]
        %v892 = vld [vmem:[%s348 + $0x190] sm:$0xff]
        %v893 = vld [vmem:[%s348 + $0x1b0] sm:$0xff]
        %v894 = vld [vmem:[%s348 + $0x1d0] sm:$0xff]
        %v895 = vld [vmem:[%s348 + $0x1f0] sm:$0xff]
        %v912 = vunpack.c.l.b16 %v880
        %v913 = vunpack.c.h.b16 %v880
        %v914 = vunpack.c.l.b16 %v881
        %v915 = vunpack.c.h.b16 %v881
        %v916 = vunpack.c.l.b16 %v882
        %v917 = vunpack.c.h.b16 %v882
        %v918 = vunpack.c.l.b16 %v883
        %v919 = vunpack.c.h.b16 %v883
        %v920 = vunpack.c.l.b16 %v884
        %v921 = vunpack.c.h.b16 %v884
        %v922 = vunpack.c.l.b16 %v885
        %v923 = vunpack.c.h.b16 %v885
        %v924 = vunpack.c.l.b16 %v886
        %v925 = vunpack.c.h.b16 %v886
        %v926 = vunpack.c.l.b16 %v887
        %v927 = vunpack.c.h.b16 %v887
        %v928 = vunpack.c.l.b16 %v888
        %v929 = vunpack.c.h.b16 %v888
        %v930 = vunpack.c.l.b16 %v889
        %v931 = vunpack.c.h.b16 %v889
        %v932 = vunpack.c.l.b16 %v890
        %v933 = vunpack.c.h.b16 %v890
        %v934 = vunpack.c.l.b16 %v891
        %v935 = vunpack.c.h.b16 %v891
        %v936 = vunpack.c.l.b16 %v892
        %v937 = vunpack.c.h.b16 %v892
        %v938 = vunpack.c.l.b16 %v893
        %v939 = vunpack.c.h.b16 %v893
        %v940 = vunpack.c.l.b16 %v894
        %v941 = vunpack.c.h.b16 %v894
        %v942 = vunpack.c.l.b16 %v895
        %v943 = vunpack.c.h.b16 %v895
        %v944 = vpack.c.b16 %v914, %v912
        %v945 = vpack.c.b16 %v915, %v913
        %v946 = vpack.c.b16 %v918, %v916
        %v947 = vpack.c.b16 %v919, %v917
        %v948 = vpack.c.b16 %v922, %v920
        %v949 = vpack.c.b16 %v923, %v921
        %v950 = vpack.c.b16 %v926, %v924
        %v951 = vpack.c.b16 %v927, %v925
        %v952 = vpack.c.b16 %v930, %v928
        %v953 = vpack.c.b16 %v931, %v929
        %v954 = vpack.c.b16 %v934, %v932
        %v955 = vpack.c.b16 %v935, %v933
        %v956 = vpack.c.b16 %v938, %v936
        %v957 = vpack.c.b16 %v939, %v937
        %v958 = vpack.c.b16 %v942, %v940
        %v959 = vpack.c.b16 %v943, %v941
        %976 = vmatprep.subr.bf16.mxu0 %v959
        %977 = vmatpush1.bf16.msra.mxu0 %v958
        %978 = vmatprep.subr.bf16.mxu0 %v957
        %979 = vmatpush1.bf16.msra.mxu0 %v956
        %980 = vmatprep.subr.bf16.mxu0 %v955
        %981 = vmatpush1.bf16.msra.mxu0 %v954
        %982 = vmatprep.subr.bf16.mxu0 %v953
        %983 = vmatpush1.bf16.msra.mxu0 %v952
        %984 = vmatprep.subr.bf16.mxu0 %v951
        %985 = vmatpush1.bf16.msra.mxu0 %v950
        %986 = vmatprep.subr.bf16.mxu0 %v949
        %987 = vmatpush1.bf16.msra.mxu0 %v948
        %988 = vmatprep.subr.bf16.mxu0 %v947
        %989 = vmatpush1.bf16.msra.mxu0 %v946
        %990 = vmatprep.subr.bf16.mxu0 %v945
        %991 = vmatpush1.bf16.msra.mxu0 %v944
        %992 = vmatprep.subr.bf16.mxu0 0
        %993 = vmatpush2.bf16.msra.mxu0 0
        %994 = vmatprep.subr.bf16.mxu0 0
        %995 = vmatpush2.bf16.msra.mxu0 0
        %996 = vmatprep.subr.bf16.mxu0 0
        %997 = vmatpush2.bf16.msra.mxu0 0
        %998 = vmatprep.subr.bf16.mxu0 0
        %999 = vmatpush2.bf16.msra.mxu0 0
        %1000 = vmatprep.subr.bf16.mxu0 0
        %1001 = vmatpush2.bf16.msra.mxu0 0
        %1002 = vmatprep.subr.bf16.mxu0 0
        %1003 = vmatpush2.bf16.msra.mxu0 0
        %1004 = vmatprep.subr.bf16.mxu0 0
        %1005 = vmatpush2.bf16.msra.mxu0 0
        %1006 = vmatprep.subr.bf16.mxu0 0
        %1007 = vmatpush2.bf16.msra.mxu0 0
        %1008 = vmatprep.mubr.bf16.mxu0 0
        %1009 = vmatmul.mubr.bf16.gmra.mxu0 %v523
        %v1010 = vpop.f32.mrf.mxu0
        %v1011 = vadd.f32 0.0, %v1010
        %v1012 = vpop.f32.mrf.mxu0
        %v1013 = vadd.f32 0.0, %v1012
        %v1014 = vpop.f32.mrf.mxu0
        %v1015 = vadd.f32 0.0, %v1014
        %v1016 = vpop.f32.mrf.mxu0
        %v1017 = vadd.f32 0.0, %v1016
        %1018 = vdwg.mxu0
        %v1019 = vmax.f32 %v1011, %v1015
        %v1020 = vrot.slane %v1019, 4
        %v1021 = vmax.f32 %v1019, %v1020
        %v1022 = vrot.slane %v1021, 2
        %v1023 = vmax.f32 %v1021, %v1022
        %v1024 = vrot.slane %v1023, 1
        %v1025 = vmax.f32 %v1023, %v1024
        %v1026 = vmax.f32 %v1013, %v1017
        %v1027 = vrot.slane %v1026, 4
        %v1028 = vmax.f32 %v1026, %v1027
        %v1029 = vrot.slane %v1028, 2
        %v1030 = vmax.f32 %v1028, %v1029
        %v1031 = vrot.slane %v1030, 1
        %v1032 = vmax.f32 %v1030, %v1031
        %v1033 = vld [vmem:[%s362 + $0x4] sm:$0x3]
        %v1036 = vcombine.low %v1025, %v1032
        %v1038 = vunpack.c.l.s4 1966171168
        %v1039 = vunpack.c.0.s8 %v1038
        %v1040 = vlaneseq
        %v1041 = vshrl.u32 %v1040, 7
        %v1042 = vsub.s32 %v1039, %v1041
        %v1043 = vrot.slane %v1036, %v1042
        %v1045 = vunpack.c.l.s4 1966171168
        %v1046 = vunpack.c.0.s8 %v1045
        %v1047 = vlaneseq
        %v1048 = vshrl.u32 %v1047, 7
        %v1049 = vsub.s32 %v1046, %v1048
        %v1050 = vrot.slane %v1043, %v1049
        %v1052 = vmax.f32 %v1033, %v1050
        %1053 = vst.msk [vmem:[%s362 + $0x4] sm:$0x3] %vm704, %v1052
        %v1054 = vld [vmem:[%s348 + $0x18] sm:$0xff]
        %v1055 = vld [vmem:[%s348 + $0x38] sm:$0xff]
        %v1056 = vld [vmem:[%s348 + $0x58] sm:$0xff]
        %v1057 = vld [vmem:[%s348 + $0x78] sm:$0xff]
        %v1058 = vld [vmem:[%s348 + $0x98] sm:$0xff]
        %v1059 = vld [vmem:[%s348 + $0xb8] sm:$0xff]
        %v1060 = vld [vmem:[%s348 + $0xd8] sm:$0xff]
        %v1061 = vld [vmem:[%s348 + $0xf8] sm:$0xff]
        %v1062 = vld [vmem:[%s348 + $0x118] sm:$0xff]
        %v1063 = vld [vmem:[%s348 + $0x138] sm:$0xff]
        %v1064 = vld [vmem:[%s348 + $0x158] sm:$0xff]
        %v1065 = vld [vmem:[%s348 + $0x178] sm:$0xff]
        %v1066 = vld [vmem:[%s348 + $0x198] sm:$0xff]
        %v1067 = vld [vmem:[%s348 + $0x1b8] sm:$0xff]
        %v1068 = vld [vmem:[%s348 + $0x1d8] sm:$0xff]
        %v1069 = vld [vmem:[%s348 + $0x1f8] sm:$0xff]
        %v1086 = vunpack.c.l.b16 %v1054
        %v1087 = vunpack.c.h.b16 %v1054
        %v1088 = vunpack.c.l.b16 %v1055
        %v1089 = vunpack.c.h.b16 %v1055
        %v1090 = vunpack.c.l.b16 %v1056
        %v1091 = vunpack.c.h.b16 %v1056
        %v1092 = vunpack.c.l.b16 %v1057
        %v1093 = vunpack.c.h.b16 %v1057
        %v1094 = vunpack.c.l.b16 %v1058
        %v1095 = vunpack.c.h.b16 %v1058
        %v1096 = vunpack.c.l.b16 %v1059
        %v1097 = vunpack.c.h.b16 %v1059
        %v1098 = vunpack.c.l.b16 %v1060
        %v1099 = vunpack.c.h.b16 %v1060
        %v1100 = vunpack.c.l.b16 %v1061
        %v1101 = vunpack.c.h.b16 %v1061
        %v1102 = vunpack.c.l.b16 %v1062
        %v1103 = vunpack.c.h.b16 %v1062
        %v1104 = vunpack.c.l.b16 %v1063
        %v1105 = vunpack.c.h.b16 %v1063
        %v1106 = vunpack.c.l.b16 %v1064
        %v1107 = vunpack.c.h.b16 %v1064
        %v1108 = vunpack.c.l.b16 %v1065
        %v1109 = vunpack.c.h.b16 %v1065
        %v1110 = vunpack.c.l.b16 %v1066
        %v1111 = vunpack.c.h.b16 %v1066
        %v1112 = vunpack.c.l.b16 %v1067
        %v1113 = vunpack.c.h.b16 %v1067
        %v1114 = vunpack.c.l.b16 %v1068
        %v1115 = vunpack.c.h.b16 %v1068
        %v1116 = vunpack.c.l.b16 %v1069
        %v1117 = vunpack.c.h.b16 %v1069
        %v1118 = vpack.c.b16 %v1088, %v1086
        %v1119 = vpack.c.b16 %v1089, %v1087
        %v1120 = vpack.c.b16 %v1092, %v1090
        %v1121 = vpack.c.b16 %v1093, %v1091
        %v1122 = vpack.c.b16 %v1096, %v1094
        %v1123 = vpack.c.b16 %v1097, %v1095
        %v1124 = vpack.c.b16 %v1100, %v1098
        %v1125 = vpack.c.b16 %v1101, %v1099
        %v1126 = vpack.c.b16 %v1104, %v1102
        %v1127 = vpack.c.b16 %v1105, %v1103
        %v1128 = vpack.c.b16 %v1108, %v1106
        %v1129 = vpack.c.b16 %v1109, %v1107
        %v1130 = vpack.c.b16 %v1112, %v1110
        %v1131 = vpack.c.b16 %v1113, %v1111
        %v1132 = vpack.c.b16 %v1116, %v1114
        %v1133 = vpack.c.b16 %v1117, %v1115
        %1150 = vmatprep.subr.bf16.mxu0 %v1133
        %1151 = vmatpush1.bf16.msra.mxu0 %v1132
        %1152 = vmatprep.subr.bf16.mxu0 %v1131
        %1153 = vmatpush1.bf16.msra.mxu0 %v1130
        %1154 = vmatprep.subr.bf16.mxu0 %v1129
        %1155 = vmatpush1.bf16.msra.mxu0 %v1128
        %1156 = vmatprep.subr.bf16.mxu0 %v1127
        %1157 = vmatpush1.bf16.msra.mxu0 %v1126
        %1158 = vmatprep.subr.bf16.mxu0 %v1125
        %1159 = vmatpush1.bf16.msra.mxu0 %v1124
        %1160 = vmatprep.subr.bf16.mxu0 %v1123
        %1161 = vmatpush1.bf16.msra.mxu0 %v1122
        %1162 = vmatprep.subr.bf16.mxu0 %v1121
        %1163 = vmatpush1.bf16.msra.mxu0 %v1120
        %1164 = vmatprep.subr.bf16.mxu0 %v1119
        %1165 = vmatpush1.bf16.msra.mxu0 %v1118
        %1166 = vmatprep.subr.bf16.mxu0 0
        %1167 = vmatpush2.bf16.msra.mxu0 0
        %1168 = vmatprep.subr.bf16.mxu0 0
        %1169 = vmatpush2.bf16.msra.mxu0 0
        %1170 = vmatprep.subr.bf16.mxu0 0
        %1171 = vmatpush2.bf16.msra.mxu0 0
        %1172 = vmatprep.subr.bf16.mxu0 0
        %1173 = vmatpush2.bf16.msra.mxu0 0
        %1174 = vmatprep.subr.bf16.mxu0 0
        %1175 = vmatpush2.bf16.msra.mxu0 0
        %1176 = vmatprep.subr.bf16.mxu0 0
        %1177 = vmatpush2.bf16.msra.mxu0 0
        %1178 = vmatprep.subr.bf16.mxu0 0
        %1179 = vmatpush2.bf16.msra.mxu0 0
        %1180 = vmatprep.subr.bf16.mxu0 0
        %1181 = vmatpush2.bf16.msra.mxu0 0
        %1182 = vmatprep.mubr.bf16.mxu0 0
        %1183 = vmatmul.mubr.bf16.gmra.mxu0 %v523
        %v1184 = vpop.f32.mrf.mxu0
        %v1185 = vadd.f32 0.0, %v1184
        %v1186 = vpop.f32.mrf.mxu0
        %v1187 = vadd.f32 0.0, %v1186
        %v1188 = vpop.f32.mrf.mxu0
        %v1189 = vadd.f32 0.0, %v1188
        %v1190 = vpop.f32.mrf.mxu0
        %v1191 = vadd.f32 0.0, %v1190
        %1192 = vdwg.mxu0
        %v1193 = vmax.f32 %v1185, %v1189
        %v1194 = vrot.slane %v1193, 4
        %v1195 = vmax.f32 %v1193, %v1194
        %v1196 = vrot.slane %v1195, 2
        %v1197 = vmax.f32 %v1195, %v1196
        %v1198 = vrot.slane %v1197, 1
        %v1199 = vmax.f32 %v1197, %v1198
        %v1200 = vmax.f32 %v1187, %v1191
        %v1201 = vrot.slane %v1200, 4
        %v1202 = vmax.f32 %v1200, %v1201
        %v1203 = vrot.slane %v1202, 2
        %v1204 = vmax.f32 %v1202, %v1203
        %v1205 = vrot.slane %v1204, 1
        %v1206 = vmax.f32 %v1204, %v1205
        %v1207 = vld [vmem:[%s362 + $0x6] sm:$0x3]
        %v1210 = vcombine.low %v1199, %v1206
        %v1212 = vunpack.c.l.s4 1966171168
        %v1213 = vunpack.c.0.s8 %v1212
        %v1214 = vlaneseq
        %v1215 = vshrl.u32 %v1214, 7
        %v1216 = vsub.s32 %v1213, %v1215
        %v1217 = vrot.slane %v1210, %v1216
        %v1219 = vunpack.c.l.s4 1966171168
        %v1220 = vunpack.c.0.s8 %v1219
        %v1221 = vlaneseq
        %v1222 = vshrl.u32 %v1221, 7
        %v1223 = vsub.s32 %v1220, %v1222
        %v1224 = vrot.slane %v1217, %v1223
        %v1226 = vmax.f32 %v1207, %v1224
        %1227 = vst.msk [vmem:[%s362 + $0x6] sm:$0x3] %vm704, %v1226
      $region56: #{pointnet_feat.1} parent=47 // pred_fallthru
        _
      %p1228 = scmp.eq.s32.totalorder %s25, 2
      // Predicated region
      $region57: #{pointnet_feat.1} parent=47 // pred_check
        %p1229 = pneg %p1228
      $region58: #{pointnet_feat.1} parent=47 // pred_check_branch
        %1231 = sbr.rel (%p1229) target = $region60
      $region59: #{pointnet_feat.1} parent=47 // pred_region
        %s1232 = smul.u32 %s25, 16
        %v1233 = vlaneseq
        %v1234 = vshrl.u32 %v1233, 7
        %v1235 = vadd.s32 %v1234, 8
        %v1236 = vstv %s1232
        %v1237 = vadd.s32 %v1236, %v1234
        %v1238 = vadd.s32 %v1236, %v1235
        %vm1239 = vcmp.lt.s32.totalorder %v1237, 40
        %vm1240 = vcmp.lt.s32.totalorder %v1238, 40
        %v1241 = vld [vmem:[%s348] sm:$0xff]
        %v1242 = vld [vmem:[%s348 + $0x20] sm:$0xff]
        %v1243 = vld [vmem:[%s348 + $0x40] sm:$0xff]
        %v1244 = vld [vmem:[%s348 + $0x60] sm:$0xff]
        %v1245 = vld [vmem:[%s348 + $0x80] sm:$0xff]
        %v1246 = vld [vmem:[%s348 + $0xa0] sm:$0xff]
        %v1247 = vld [vmem:[%s348 + $0xc0] sm:$0xff]
        %v1248 = vld [vmem:[%s348 + $0xe0] sm:$0xff]
        %v1249 = vld [vmem:[%s348 + $0x100] sm:$0xff]
        %v1250 = vld [vmem:[%s348 + $0x120] sm:$0xff]
        %v1251 = vld [vmem:[%s348 + $0x140] sm:$0xff]
        %v1252 = vld [vmem:[%s348 + $0x160] sm:$0xff]
        %v1253 = vld [vmem:[%s348 + $0x180] sm:$0xff]
        %v1254 = vld [vmem:[%s348 + $0x1a0] sm:$0xff]
        %v1255 = vld [vmem:[%s348 + $0x1c0] sm:$0xff]
        %v1256 = vld [vmem:[%s348 + $0x1e0] sm:$0xff]
        %v1273 = vunpack.c.l.b16 %v1241
        %v1274 = vunpack.c.h.b16 %v1241
        %v1275 = vunpack.c.l.b16 %v1242
        %v1276 = vunpack.c.h.b16 %v1242
        %v1277 = vunpack.c.l.b16 %v1243
        %v1278 = vunpack.c.h.b16 %v1243
        %v1279 = vunpack.c.l.b16 %v1244
        %v1280 = vunpack.c.h.b16 %v1244
        %v1281 = vunpack.c.l.b16 %v1245
        %v1282 = vunpack.c.h.b16 %v1245
        %v1283 = vunpack.c.l.b16 %v1246
        %v1284 = vunpack.c.h.b16 %v1246
        %v1285 = vunpack.c.l.b16 %v1247
        %v1286 = vunpack.c.h.b16 %v1247
        %v1287 = vunpack.c.l.b16 %v1248
        %v1288 = vunpack.c.h.b16 %v1248
        %v1289 = vunpack.c.l.b16 %v1249
        %v1290 = vunpack.c.h.b16 %v1249
        %v1291 = vunpack.c.l.b16 %v1250
        %v1292 = vunpack.c.h.b16 %v1250
        %v1293 = vunpack.c.l.b16 %v1251
        %v1294 = vunpack.c.h.b16 %v1251
        %v1295 = vunpack.c.l.b16 %v1252
        %v1296 = vunpack.c.h.b16 %v1252
        %v1297 = vunpack.c.l.b16 %v1253
        %v1298 = vunpack.c.h.b16 %v1253
        %v1299 = vunpack.c.l.b16 %v1254
        %v1300 = vunpack.c.h.b16 %v1254
        %v1301 = vunpack.c.l.b16 %v1255
        %v1302 = vunpack.c.h.b16 %v1255
        %v1303 = vunpack.c.l.b16 %v1256
        %v1304 = vunpack.c.h.b16 %v1256
        %v1305 = vpack.c.b16 %v1275, %v1273
        %v1306 = vpack.c.b16 %v1276, %v1274
        %v1307 = vpack.c.b16 %v1279, %v1277
        %v1308 = vpack.c.b16 %v1280, %v1278
        %v1309 = vpack.c.b16 %v1283, %v1281
        %v1310 = vpack.c.b16 %v1284, %v1282
        %v1311 = vpack.c.b16 %v1287, %v1285
        %v1312 = vpack.c.b16 %v1288, %v1286
        %v1313 = vpack.c.b16 %v1291, %v1289
        %v1314 = vpack.c.b16 %v1292, %v1290
        %v1315 = vpack.c.b16 %v1295, %v1293
        %v1316 = vpack.c.b16 %v1296, %v1294
        %v1317 = vpack.c.b16 %v1299, %v1297
        %v1318 = vpack.c.b16 %v1300, %v1298
        %v1319 = vpack.c.b16 %v1303, %v1301
        %v1320 = vpack.c.b16 %v1304, %v1302
        %1337 = vmatprep.subr.bf16.mxu0 %v1320
        %1338 = vmatpush1.bf16.msra.mxu0 %v1319
        %1339 = vmatprep.subr.bf16.mxu0 %v1318
        %1340 = vmatpush1.bf16.msra.mxu0 %v1317
        %1341 = vmatprep.subr.bf16.mxu0 %v1316
        %1342 = vmatpush1.bf16.msra.mxu0 %v1315
        %1343 = vmatprep.subr.bf16.mxu0 %v1314
        %1344 = vmatpush1.bf16.msra.mxu0 %v1313
        %1345 = vmatprep.subr.bf16.mxu0 %v1312
        %1346 = vmatpush1.bf16.msra.mxu0 %v1311
        %1347 = vmatprep.subr.bf16.mxu0 %v1310
        %1348 = vmatpush1.bf16.msra.mxu0 %v1309
        %1349 = vmatprep.subr.bf16.mxu0 %v1308
        %1350 = vmatpush1.bf16.msra.mxu0 %v1307
        %1351 = vmatprep.subr.bf16.mxu0 %v1306
        %1352 = vmatpush1.bf16.msra.mxu0 %v1305
        %1353 = vmatprep.subr.bf16.mxu0 0
        %1354 = vmatpush2.bf16.msra.mxu0 0
        %1355 = vmatprep.subr.bf16.mxu0 0
        %1356 = vmatpush2.bf16.msra.mxu0 0
        %1357 = vmatprep.subr.bf16.mxu0 0
        %1358 = vmatpush2.bf16.msra.mxu0 0
        %1359 = vmatprep.subr.bf16.mxu0 0
        %1360 = vmatpush2.bf16.msra.mxu0 0
        %1361 = vmatprep.subr.bf16.mxu0 0
        %1362 = vmatpush2.bf16.msra.mxu0 0
        %1363 = vmatprep.subr.bf16.mxu0 0
        %1364 = vmatpush2.bf16.msra.mxu0 0
        %1365 = vmatprep.subr.bf16.mxu0 0
        %1366 = vmatpush2.bf16.msra.mxu0 0
        %1367 = vmatprep.subr.bf16.mxu0 0
        %1368 = vmatpush2.bf16.msra.mxu0 0
        %1369 = vmatprep.mubr.bf16.mxu0 0
        %1370 = vmatmul.mubr.bf16.gmra.mxu0 %v523
        %v1371 = vpop.f32.mrf.mxu0
        %v1372 = vadd.f32 0.0, %v1371
        %v1373 = vpop.f32.mrf.mxu0
        %v1374 = vadd.f32 0.0, %v1373
        %v1375 = vpop.f32.mrf.mxu0
        %v1376 = vadd.f32 0.0, %v1375
        %v1377 = vpop.f32.mrf.mxu0
        %v1378 = vadd.f32 0.0, %v1377
        %1379 = vdwg.mxu0
        %v1380 = vsel %vm1239, 1, 0
        %v1381 = vsel %vm1240, 1, 0
        %vm1382 = vcmp.eq.s32.totalorder %v1380, 1
        %vm1383 = vcmp.eq.s32.totalorder %v1381, 1
        %v1384 = vsel %vm1382, %v1372, -inf
        %v1385 = vsel %vm1382, %v1374, -inf
        %v1386 = vsel %vm1383, %v1376, -inf
        %v1387 = vsel %vm1383, %v1378, -inf
        %v1388 = vmax.f32 %v1384, %v1386
        %v1389 = vrot.slane %v1388, 4
        %v1390 = vmax.f32 %v1388, %v1389
        %v1391 = vrot.slane %v1390, 2
        %v1392 = vmax.f32 %v1390, %v1391
        %v1393 = vrot.slane %v1392, 1
        %v1394 = vmax.f32 %v1392, %v1393
        %v1395 = vmax.f32 %v1385, %v1387
        %v1396 = vrot.slane %v1395, 4
        %v1397 = vmax.f32 %v1395, %v1396
        %v1398 = vrot.slane %v1397, 2
        %v1399 = vmax.f32 %v1397, %v1398
        %v1400 = vrot.slane %v1399, 1
        %v1401 = vmax.f32 %v1399, %v1400
        %v1402 = vld [vmem:[%s362] sm:$0x3]
        %v1405 = vcombine.low %v1394, %v1401
        %v1407 = vunpack.c.l.s4 1966171168
        %v1408 = vunpack.c.0.s8 %v1407
        %v1409 = vlaneseq
        %v1410 = vshrl.u32 %v1409, 7
        %v1411 = vsub.s32 %v1408, %v1410
        %v1412 = vrot.slane %v1405, %v1411
        %v1414 = vunpack.c.l.s4 1966171168
        %v1415 = vunpack.c.0.s8 %v1414
        %v1416 = vlaneseq
        %v1417 = vshrl.u32 %v1416, 7
        %v1418 = vsub.s32 %v1415, %v1417
        %v1419 = vrot.slane %v1412, %v1418
        %v1421 = vmax.f32 %v1402, %v1419
        %v1422 = vlaneseq
        %vm1423 = vcmp.ge.s32.totalorder %v1422, 0
        %vm1424 = vcmp.lt.s32.totalorder %v1422, 256
        %vm1425 = vmand %vm1423, %vm1424
        %1426 = vst.msk [vmem:[%s362] sm:$0x3] %vm1425, %v1421
        %v1427 = vld [vmem:[%s348 + $0x8] sm:$0xff]
        %v1428 = vld [vmem:[%s348 + $0x28] sm:$0xff]
        %v1429 = vld [vmem:[%s348 + $0x48] sm:$0xff]
        %v1430 = vld [vmem:[%s348 + $0x68] sm:$0xff]
        %v1431 = vld [vmem:[%s348 + $0x88] sm:$0xff]
        %v1432 = vld [vmem:[%s348 + $0xa8] sm:$0xff]
        %v1433 = vld [vmem:[%s348 + $0xc8] sm:$0xff]
        %v1434 = vld [vmem:[%s348 + $0xe8] sm:$0xff]
        %v1435 = vld [vmem:[%s348 + $0x108] sm:$0xff]
        %v1436 = vld [vmem:[%s348 + $0x128] sm:$0xff]
        %v1437 = vld [vmem:[%s348 + $0x148] sm:$0xff]
        %v1438 = vld [vmem:[%s348 + $0x168] sm:$0xff]
        %v1439 = vld [vmem:[%s348 + $0x188] sm:$0xff]
        %v1440 = vld [vmem:[%s348 + $0x1a8] sm:$0xff]
        %v1441 = vld [vmem:[%s348 + $0x1c8] sm:$0xff]
        %v1442 = vld [vmem:[%s348 + $0x1e8] sm:$0xff]
        %v1459 = vunpack.c.l.b16 %v1427
        %v1460 = vunpack.c.h.b16 %v1427
        %v1461 = vunpack.c.l.b16 %v1428
        %v1462 = vunpack.c.h.b16 %v1428
        %v1463 = vunpack.c.l.b16 %v1429
        %v1464 = vunpack.c.h.b16 %v1429
        %v1465 = vunpack.c.l.b16 %v1430
        %v1466 = vunpack.c.h.b16 %v1430
        %v1467 = vunpack.c.l.b16 %v1431
        %v1468 = vunpack.c.h.b16 %v1431
        %v1469 = vunpack.c.l.b16 %v1432
        %v1470 = vunpack.c.h.b16 %v1432
        %v1471 = vunpack.c.l.b16 %v1433
        %v1472 = vunpack.c.h.b16 %v1433
        %v1473 = vunpack.c.l.b16 %v1434
        %v1474 = vunpack.c.h.b16 %v1434
        %v1475 = vunpack.c.l.b16 %v1435
        %v1476 = vunpack.c.h.b16 %v1435
        %v1477 = vunpack.c.l.b16 %v1436
        %v1478 = vunpack.c.h.b16 %v1436
        %v1479 = vunpack.c.l.b16 %v1437
        %v1480 = vunpack.c.h.b16 %v1437
        %v1481 = vunpack.c.l.b16 %v1438
        %v1482 = vunpack.c.h.b16 %v1438
        %v1483 = vunpack.c.l.b16 %v1439
        %v1484 = vunpack.c.h.b16 %v1439
        %v1485 = vunpack.c.l.b16 %v1440
        %v1486 = vunpack.c.h.b16 %v1440
        %v1487 = vunpack.c.l.b16 %v1441
        %v1488 = vunpack.c.h.b16 %v1441
        %v1489 = vunpack.c.l.b16 %v1442
        %v1490 = vunpack.c.h.b16 %v1442
        %v1491 = vpack.c.b16 %v1461, %v1459
        %v1492 = vpack.c.b16 %v1462, %v1460
        %v1493 = vpack.c.b16 %v1465, %v1463
        %v1494 = vpack.c.b16 %v1466, %v1464
        %v1495 = vpack.c.b16 %v1469, %v1467
        %v1496 = vpack.c.b16 %v1470, %v1468
        %v1497 = vpack.c.b16 %v1473, %v1471
        %v1498 = vpack.c.b16 %v1474, %v1472
        %v1499 = vpack.c.b16 %v1477, %v1475
        %v1500 = vpack.c.b16 %v1478, %v1476
        %v1501 = vpack.c.b16 %v1481, %v1479
        %v1502 = vpack.c.b16 %v1482, %v1480
        %v1503 = vpack.c.b16 %v1485, %v1483
        %v1504 = vpack.c.b16 %v1486, %v1484
        %v1505 = vpack.c.b16 %v1489, %v1487
        %v1506 = vpack.c.b16 %v1490, %v1488
        %1523 = vmatprep.subr.bf16.mxu0 %v1506
        %1524 = vmatpush1.bf16.msra.mxu0 %v1505
        %1525 = vmatprep.subr.bf16.mxu0 %v1504
        %1526 = vmatpush1.bf16.msra.mxu0 %v1503
        %1527 = vmatprep.subr.bf16.mxu0 %v1502
        %1528 = vmatpush1.bf16.msra.mxu0 %v1501
        %1529 = vmatprep.subr.bf16.mxu0 %v1500
        %1530 = vmatpush1.bf16.msra.mxu0 %v1499
        %1531 = vmatprep.subr.bf16.mxu0 %v1498
        %1532 = vmatpush1.bf16.msra.mxu0 %v1497
        %1533 = vmatprep.subr.bf16.mxu0 %v1496
        %1534 = vmatpush1.bf16.msra.mxu0 %v1495
        %1535 = vmatprep.subr.bf16.mxu0 %v1494
        %1536 = vmatpush1.bf16.msra.mxu0 %v1493
        %1537 = vmatprep.subr.bf16.mxu0 %v1492
        %1538 = vmatpush1.bf16.msra.mxu0 %v1491
        %1539 = vmatprep.subr.bf16.mxu0 0
        %1540 = vmatpush2.bf16.msra.mxu0 0
        %1541 = vmatprep.subr.bf16.mxu0 0
        %1542 = vmatpush2.bf16.msra.mxu0 0
        %1543 = vmatprep.subr.bf16.mxu0 0
        %1544 = vmatpush2.bf16.msra.mxu0 0
        %1545 = vmatprep.subr.bf16.mxu0 0
        %1546 = vmatpush2.bf16.msra.mxu0 0
        %1547 = vmatprep.subr.bf16.mxu0 0
        %1548 = vmatpush2.bf16.msra.mxu0 0
        %1549 = vmatprep.subr.bf16.mxu0 0
        %1550 = vmatpush2.bf16.msra.mxu0 0
        %1551 = vmatprep.subr.bf16.mxu0 0
        %1552 = vmatpush2.bf16.msra.mxu0 0
        %1553 = vmatprep.subr.bf16.mxu0 0
        %1554 = vmatpush2.bf16.msra.mxu0 0
        %1555 = vmatprep.mubr.bf16.mxu0 0
        %1556 = vmatmul.mubr.bf16.gmra.mxu0 %v523
        %v1557 = vpop.f32.mrf.mxu0
        %v1558 = vadd.f32 0.0, %v1557
        %v1559 = vpop.f32.mrf.mxu0
        %v1560 = vadd.f32 0.0, %v1559
        %v1561 = vpop.f32.mrf.mxu0
        %v1562 = vadd.f32 0.0, %v1561
        %v1563 = vpop.f32.mrf.mxu0
        %v1564 = vadd.f32 0.0, %v1563
        %1565 = vdwg.mxu0
        %v1566 = vsel %vm1382, %v1558, -inf
        %v1567 = vsel %vm1382, %v1560, -inf
        %v1568 = vsel %vm1383, %v1562, -inf
        %v1569 = vsel %vm1383, %v1564, -inf
        %v1570 = vmax.f32 %v1566, %v1568
        %v1571 = vrot.slane %v1570, 4
        %v1572 = vmax.f32 %v1570, %v1571
        %v1573 = vrot.slane %v1572, 2
        %v1574 = vmax.f32 %v1572, %v1573
        %v1575 = vrot.slane %v1574, 1
        %v1576 = vmax.f32 %v1574, %v1575
        %v1577 = vmax.f32 %v1567, %v1569
        %v1578 = vrot.slane %v1577, 4
        %v1579 = vmax.f32 %v1577, %v1578
        %v1580 = vrot.slane %v1579, 2
        %v1581 = vmax.f32 %v1579, %v1580
        %v1582 = vrot.slane %v1581, 1
        %v1583 = vmax.f32 %v1581, %v1582
        %v1584 = vld [vmem:[%s362 + $0x2] sm:$0x3]
        %v1587 = vcombine.low %v1576, %v1583
        %v1589 = vunpack.c.l.s4 1966171168
        %v1590 = vunpack.c.0.s8 %v1589
        %v1591 = vlaneseq
        %v1592 = vshrl.u32 %v1591, 7
        %v1593 = vsub.s32 %v1590, %v1592
        %v1594 = vrot.slane %v1587, %v1593
        %v1596 = vunpack.c.l.s4 1966171168
        %v1597 = vunpack.c.0.s8 %v1596
        %v1598 = vlaneseq
        %v1599 = vshrl.u32 %v1598, 7
        %v1600 = vsub.s32 %v1597, %v1599
        %v1601 = vrot.slane %v1594, %v1600
        %v1603 = vmax.f32 %v1584, %v1601
        %1604 = vst.msk [vmem:[%s362 + $0x2] sm:$0x3] %vm1425, %v1603
        %v1605 = vld [vmem:[%s348 + $0x10] sm:$0xff]
        %v1606 = vld [vmem:[%s348 + $0x30] sm:$0xff]
        %v1607 = vld [vmem:[%s348 + $0x50] sm:$0xff]
        %v1608 = vld [vmem:[%s348 + $0x70] sm:$0xff]
        %v1609 = vld [vmem:[%s348 + $0x90] sm:$0xff]
        %v1610 = vld [vmem:[%s348 + $0xb0] sm:$0xff]
        %v1611 = vld [vmem:[%s348 + $0xd0] sm:$0xff]
        %v1612 = vld [vmem:[%s348 + $0xf0] sm:$0xff]
        %v1613 = vld [vmem:[%s348 + $0x110] sm:$0xff]
        %v1614 = vld [vmem:[%s348 + $0x130] sm:$0xff]
        %v1615 = vld [vmem:[%s348 + $0x150] sm:$0xff]
        %v1616 = vld [vmem:[%s348 + $0x170] sm:$0xff]
        %v1617 = vld [vmem:[%s348 + $0x190] sm:$0xff]
        %v1618 = vld [vmem:[%s348 + $0x1b0] sm:$0xff]
        %v1619 = vld [vmem:[%s348 + $0x1d0] sm:$0xff]
        %v1620 = vld [vmem:[%s348 + $0x1f0] sm:$0xff]
        %v1637 = vunpack.c.l.b16 %v1605
        %v1638 = vunpack.c.h.b16 %v1605
        %v1639 = vunpack.c.l.b16 %v1606
        %v1640 = vunpack.c.h.b16 %v1606
        %v1641 = vunpack.c.l.b16 %v1607
        %v1642 = vunpack.c.h.b16 %v1607
        %v1643 = vunpack.c.l.b16 %v1608
        %v1644 = vunpack.c.h.b16 %v1608
        %v1645 = vunpack.c.l.b16 %v1609
        %v1646 = vunpack.c.h.b16 %v1609
        %v1647 = vunpack.c.l.b16 %v1610
        %v1648 = vunpack.c.h.b16 %v1610
        %v1649 = vunpack.c.l.b16 %v1611
        %v1650 = vunpack.c.h.b16 %v1611
        %v1651 = vunpack.c.l.b16 %v1612
        %v1652 = vunpack.c.h.b16 %v1612
        %v1653 = vunpack.c.l.b16 %v1613
        %v1654 = vunpack.c.h.b16 %v1613
        %v1655 = vunpack.c.l.b16 %v1614
        %v1656 = vunpack.c.h.b16 %v1614
        %v1657 = vunpack.c.l.b16 %v1615
        %v1658 = vunpack.c.h.b16 %v1615
        %v1659 = vunpack.c.l.b16 %v1616
        %v1660 = vunpack.c.h.b16 %v1616
        %v1661 = vunpack.c.l.b16 %v1617
        %v1662 = vunpack.c.h.b16 %v1617
        %v1663 = vunpack.c.l.b16 %v1618
        %v1664 = vunpack.c.h.b16 %v1618
        %v1665 = vunpack.c.l.b16 %v1619
        %v1666 = vunpack.c.h.b16 %v1619
        %v1667 = vunpack.c.l.b16 %v1620
        %v1668 = vunpack.c.h.b16 %v1620
        %v1669 = vpack.c.b16 %v1639, %v1637
        %v1670 = vpack.c.b16 %v1640, %v1638
        %v1671 = vpack.c.b16 %v1643, %v1641
        %v1672 = vpack.c.b16 %v1644, %v1642
        %v1673 = vpack.c.b16 %v1647, %v1645
        %v1674 = vpack.c.b16 %v1648, %v1646
        %v1675 = vpack.c.b16 %v1651, %v1649
        %v1676 = vpack.c.b16 %v1652, %v1650
        %v1677 = vpack.c.b16 %v1655, %v1653
        %v1678 = vpack.c.b16 %v1656, %v1654
        %v1679 = vpack.c.b16 %v1659, %v1657
        %v1680 = vpack.c.b16 %v1660, %v1658
        %v1681 = vpack.c.b16 %v1663, %v1661
        %v1682 = vpack.c.b16 %v1664, %v1662
        %v1683 = vpack.c.b16 %v1667, %v1665
        %v1684 = vpack.c.b16 %v1668, %v1666
        %1701 = vmatprep.subr.bf16.mxu0 %v1684
        %1702 = vmatpush1.bf16.msra.mxu0 %v1683
        %1703 = vmatprep.subr.bf16.mxu0 %v1682
        %1704 = vmatpush1.bf16.msra.mxu0 %v1681
        %1705 = vmatprep.subr.bf16.mxu0 %v1680
        %1706 = vmatpush1.bf16.msra.mxu0 %v1679
        %1707 = vmatprep.subr.bf16.mxu0 %v1678
        %1708 = vmatpush1.bf16.msra.mxu0 %v1677
        %1709 = vmatprep.subr.bf16.mxu0 %v1676
        %1710 = vmatpush1.bf16.msra.mxu0 %v1675
        %1711 = vmatprep.subr.bf16.mxu0 %v1674
        %1712 = vmatpush1.bf16.msra.mxu0 %v1673
        %1713 = vmatprep.subr.bf16.mxu0 %v1672
        %1714 = vmatpush1.bf16.msra.mxu0 %v1671
        %1715 = vmatprep.subr.bf16.mxu0 %v1670
        %1716 = vmatpush1.bf16.msra.mxu0 %v1669
        %1717 = vmatprep.subr.bf16.mxu0 0
        %1718 = vmatpush2.bf16.msra.mxu0 0
        %1719 = vmatprep.subr.bf16.mxu0 0
        %1720 = vmatpush2.bf16.msra.mxu0 0
        %1721 = vmatprep.subr.bf16.mxu0 0
        %1722 = vmatpush2.bf16.msra.mxu0 0
        %1723 = vmatprep.subr.bf16.mxu0 0
        %1724 = vmatpush2.bf16.msra.mxu0 0
        %1725 = vmatprep.subr.bf16.mxu0 0
        %1726 = vmatpush2.bf16.msra.mxu0 0
        %1727 = vmatprep.subr.bf16.mxu0 0
        %1728 = vmatpush2.bf16.msra.mxu0 0
        %1729 = vmatprep.subr.bf16.mxu0 0
        %1730 = vmatpush2.bf16.msra.mxu0 0
        %1731 = vmatprep.subr.bf16.mxu0 0
        %1732 = vmatpush2.bf16.msra.mxu0 0
        %1733 = vmatprep.mubr.bf16.mxu0 0
        %1734 = vmatmul.mubr.bf16.gmra.mxu0 %v523
        %v1735 = vpop.f32.mrf.mxu0
        %v1736 = vadd.f32 0.0, %v1735
        %v1737 = vpop.f32.mrf.mxu0
        %v1738 = vadd.f32 0.0, %v1737
        %v1739 = vpop.f32.mrf.mxu0
        %v1740 = vadd.f32 0.0, %v1739
        %v1741 = vpop.f32.mrf.mxu0
        %v1742 = vadd.f32 0.0, %v1741
        %1743 = vdwg.mxu0
        %v1744 = vsel %vm1382, %v1736, -inf
        %v1745 = vsel %vm1382, %v1738, -inf
        %v1746 = vsel %vm1383, %v1740, -inf
        %v1747 = vsel %vm1383, %v1742, -inf
        %v1748 = vmax.f32 %v1744, %v1746
        %v1749 = vrot.slane %v1748, 4
        %v1750 = vmax.f32 %v1748, %v1749
        %v1751 = vrot.slane %v1750, 2
        %v1752 = vmax.f32 %v1750, %v1751
        %v1753 = vrot.slane %v1752, 1
        %v1754 = vmax.f32 %v1752, %v1753
        %v1755 = vmax.f32 %v1745, %v1747
        %v1756 = vrot.slane %v1755, 4
        %v1757 = vmax.f32 %v1755, %v1756
        %v1758 = vrot.slane %v1757, 2
        %v1759 = vmax.f32 %v1757, %v1758
        %v1760 = vrot.slane %v1759, 1
        %v1761 = vmax.f32 %v1759, %v1760
        %v1762 = vld [vmem:[%s362 + $0x4] sm:$0x3]
        %v1765 = vcombine.low %v1754, %v1761
        %v1767 = vunpack.c.l.s4 1966171168
        %v1768 = vunpack.c.0.s8 %v1767
        %v1769 = vlaneseq
        %v1770 = vshrl.u32 %v1769, 7
        %v1771 = vsub.s32 %v1768, %v1770
        %v1772 = vrot.slane %v1765, %v1771
        %v1774 = vunpack.c.l.s4 1966171168
        %v1775 = vunpack.c.0.s8 %v1774
        %v1776 = vlaneseq
        %v1777 = vshrl.u32 %v1776, 7
        %v1778 = vsub.s32 %v1775, %v1777
        %v1779 = vrot.slane %v1772, %v1778
        %v1781 = vmax.f32 %v1762, %v1779
        %1782 = vst.msk [vmem:[%s362 + $0x4] sm:$0x3] %vm1425, %v1781
        %v1783 = vld [vmem:[%s348 + $0x18] sm:$0xff]
        %v1784 = vld [vmem:[%s348 + $0x38] sm:$0xff]
        %v1785 = vld [vmem:[%s348 + $0x58] sm:$0xff]
        %v1786 = vld [vmem:[%s348 + $0x78] sm:$0xff]
        %v1787 = vld [vmem:[%s348 + $0x98] sm:$0xff]
        %v1788 = vld [vmem:[%s348 + $0xb8] sm:$0xff]
        %v1789 = vld [vmem:[%s348 + $0xd8] sm:$0xff]
        %v1790 = vld [vmem:[%s348 + $0xf8] sm:$0xff]
        %v1791 = vld [vmem:[%s348 + $0x118] sm:$0xff]
        %v1792 = vld [vmem:[%s348 + $0x138] sm:$0xff]
        %v1793 = vld [vmem:[%s348 + $0x158] sm:$0xff]
        %v1794 = vld [vmem:[%s348 + $0x178] sm:$0xff]
        %v1795 = vld [vmem:[%s348 + $0x198] sm:$0xff]
        %v1796 = vld [vmem:[%s348 + $0x1b8] sm:$0xff]
        %v1797 = vld [vmem:[%s348 + $0x1d8] sm:$0xff]
        %v1798 = vld [vmem:[%s348 + $0x1f8] sm:$0xff]
        %v1815 = vunpack.c.l.b16 %v1783
        %v1816 = vunpack.c.h.b16 %v1783
        %v1817 = vunpack.c.l.b16 %v1784
        %v1818 = vunpack.c.h.b16 %v1784
        %v1819 = vunpack.c.l.b16 %v1785
        %v1820 = vunpack.c.h.b16 %v1785
        %v1821 = vunpack.c.l.b16 %v1786
        %v1822 = vunpack.c.h.b16 %v1786
        %v1823 = vunpack.c.l.b16 %v1787
        %v1824 = vunpack.c.h.b16 %v1787
        %v1825 = vunpack.c.l.b16 %v1788
        %v1826 = vunpack.c.h.b16 %v1788
        %v1827 = vunpack.c.l.b16 %v1789
        %v1828 = vunpack.c.h.b16 %v1789
        %v1829 = vunpack.c.l.b16 %v1790
        %v1830 = vunpack.c.h.b16 %v1790
        %v1831 = vunpack.c.l.b16 %v1791
        %v1832 = vunpack.c.h.b16 %v1791
        %v1833 = vunpack.c.l.b16 %v1792
        %v1834 = vunpack.c.h.b16 %v1792
        %v1835 = vunpack.c.l.b16 %v1793
        %v1836 = vunpack.c.h.b16 %v1793
        %v1837 = vunpack.c.l.b16 %v1794
        %v1838 = vunpack.c.h.b16 %v1794
        %v1839 = vunpack.c.l.b16 %v1795
        %v1840 = vunpack.c.h.b16 %v1795
        %v1841 = vunpack.c.l.b16 %v1796
        %v1842 = vunpack.c.h.b16 %v1796
        %v1843 = vunpack.c.l.b16 %v1797
        %v1844 = vunpack.c.h.b16 %v1797
        %v1845 = vunpack.c.l.b16 %v1798
        %v1846 = vunpack.c.h.b16 %v1798
        %v1847 = vpack.c.b16 %v1817, %v1815
        %v1848 = vpack.c.b16 %v1818, %v1816
        %v1849 = vpack.c.b16 %v1821, %v1819
        %v1850 = vpack.c.b16 %v1822, %v1820
        %v1851 = vpack.c.b16 %v1825, %v1823
        %v1852 = vpack.c.b16 %v1826, %v1824
        %v1853 = vpack.c.b16 %v1829, %v1827
        %v1854 = vpack.c.b16 %v1830, %v1828
        %v1855 = vpack.c.b16 %v1833, %v1831
        %v1856 = vpack.c.b16 %v1834, %v1832
        %v1857 = vpack.c.b16 %v1837, %v1835
        %v1858 = vpack.c.b16 %v1838, %v1836
        %v1859 = vpack.c.b16 %v1841, %v1839
        %v1860 = vpack.c.b16 %v1842, %v1840
        %v1861 = vpack.c.b16 %v1845, %v1843
        %v1862 = vpack.c.b16 %v1846, %v1844
        %1879 = vmatprep.subr.bf16.mxu0 %v1862
        %1880 = vmatpush1.bf16.msra.mxu0 %v1861
        %1881 = vmatprep.subr.bf16.mxu0 %v1860
        %1882 = vmatpush1.bf16.msra.mxu0 %v1859
        %1883 = vmatprep.subr.bf16.mxu0 %v1858
        %1884 = vmatpush1.bf16.msra.mxu0 %v1857
        %1885 = vmatprep.subr.bf16.mxu0 %v1856
        %1886 = vmatpush1.bf16.msra.mxu0 %v1855
        %1887 = vmatprep.subr.bf16.mxu0 %v1854
        %1888 = vmatpush1.bf16.msra.mxu0 %v1853
        %1889 = vmatprep.subr.bf16.mxu0 %v1852
        %1890 = vmatpush1.bf16.msra.mxu0 %v1851
        %1891 = vmatprep.subr.bf16.mxu0 %v1850
        %1892 = vmatpush1.bf16.msra.mxu0 %v1849
        %1893 = vmatprep.subr.bf16.mxu0 %v1848
        %1894 = vmatpush1.bf16.msra.mxu0 %v1847
        %1895 = vmatprep.subr.bf16.mxu0 0
        %1896 = vmatpush2.bf16.msra.mxu0 0
        %1897 = vmatprep.subr.bf16.mxu0 0
        %1898 = vmatpush2.bf16.msra.mxu0 0
        %1899 = vmatprep.subr.bf16.mxu0 0
        %1900 = vmatpush2.bf16.msra.mxu0 0
        %1901 = vmatprep.subr.bf16.mxu0 0
        %1902 = vmatpush2.bf16.msra.mxu0 0
        %1903 = vmatprep.subr.bf16.mxu0 0
        %1904 = vmatpush2.bf16.msra.mxu0 0
        %1905 = vmatprep.subr.bf16.mxu0 0
        %1906 = vmatpush2.bf16.msra.mxu0 0
        %1907 = vmatprep.subr.bf16.mxu0 0
        %1908 = vmatpush2.bf16.msra.mxu0 0
        %1909 = vmatprep.subr.bf16.mxu0 0
        %1910 = vmatpush2.bf16.msra.mxu0 0
        %1911 = vmatprep.mubr.bf16.mxu0 0
        %1912 = vmatmul.mubr.bf16.gmra.mxu0 %v523
        %v1913 = vpop.f32.mrf.mxu0
        %v1914 = vadd.f32 0.0, %v1913
        %v1915 = vpop.f32.mrf.mxu0
        %v1916 = vadd.f32 0.0, %v1915
        %v1917 = vpop.f32.mrf.mxu0
        %v1918 = vadd.f32 0.0, %v1917
        %v1919 = vpop.f32.mrf.mxu0
        %v1920 = vadd.f32 0.0, %v1919
        %1921 = vdwg.mxu0
        %v1922 = vsel %vm1382, %v1914, -inf
        %v1923 = vsel %vm1382, %v1916, -inf
        %v1924 = vsel %vm1383, %v1918, -inf
        %v1925 = vsel %vm1383, %v1920, -inf
        %v1926 = vmax.f32 %v1922, %v1924
        %v1927 = vrot.slane %v1926, 4
        %v1928 = vmax.f32 %v1926, %v1927
        %v1929 = vrot.slane %v1928, 2
        %v1930 = vmax.f32 %v1928, %v1929
        %v1931 = vrot.slane %v1930, 1
        %v1932 = vmax.f32 %v1930, %v1931
        %v1933 = vmax.f32 %v1923, %v1925
        %v1934 = vrot.slane %v1933, 4
        %v1935 = vmax.f32 %v1933, %v1934
        %v1936 = vrot.slane %v1935, 2
        %v1937 = vmax.f32 %v1935, %v1936
        %v1938 = vrot.slane %v1937, 1
        %v1939 = vmax.f32 %v1937, %v1938
        %v1940 = vld [vmem:[%s362 + $0x6] sm:$0x3]
        %v1943 = vcombine.low %v1932, %v1939
        %v1945 = vunpack.c.l.s4 1966171168
        %v1946 = vunpack.c.0.s8 %v1945
        %v1947 = vlaneseq
        %v1948 = vshrl.u32 %v1947, 7
        %v1949 = vsub.s32 %v1946, %v1948
        %v1950 = vrot.slane %v1943, %v1949
        %v1952 = vunpack.c.l.s4 1966171168
        %v1953 = vunpack.c.0.s8 %v1952
        %v1954 = vlaneseq
        %v1955 = vshrl.u32 %v1954, 7
        %v1956 = vsub.s32 %v1953, %v1955
        %v1957 = vrot.slane %v1950, %v1956
        %v1959 = vmax.f32 %v1940, %v1957
        %1960 = vst.msk [vmem:[%s362 + $0x6] sm:$0x3] %vm1425, %v1959
        %v1961 = vld [vmem:[%s362] sm:$0xff]
        %v1962 = vld [vmem:[%s353] sm:$0xff]
        %v1963 = vadd.f32 %v1961, %v1962
        %1964 = vst [vmem:[%s362] sm:$0xff] %v1963
      $region60: #{pointnet_feat.1} parent=47 // pred_fallthru
        _
      %s1965 = smul.u32 8, %s24
      %p1966 = scmp.lt.s32.totalorder %s23, 1
      %s1967 = scalar_select %p1966, %s23, 1
      %p1968 = scmp.lt.s32.totalorder %s1965, 7
      %s1969 = scalar_select %p1968, %s1965, 7
      %s1970 = smul.addr %s1967, 8
      %s1971 = sadd.s32 %s1969, %s1970
      %s1972 = scalar_lea.vmem %s7, %s1971
      // Predicated region
      $region61: #{pointnet_feat.1} parent=47 // pred_check
        %p1973 = pneg %p221
      $region62: #{pointnet_feat.1} parent=47 // pred_check_branch
        %1975 = sbr.rel (%p1973) target = $region64
      $region63: #{pointnet_feat.1} parent=47 // pred_region
        %s1976 = smul.u32 8, %s24
      $region64: #{pointnet_feat.1} parent=47 // pred_fallthru
        _
    $region48: #{pointnet_feat.1} parent=5 // pred_fallthru
      _
    %p1977 = scmp.le.s32.totalorder 2, %s13
    // Predicated region
    $region65: #{pointnet_feat.1} parent=5 // pred_check
      %p1978 = pneg %p1977
    $region66: #{pointnet_feat.1} parent=5 // pred_check_branch
      %1980 = sbr.rel (%p1978) target = $region68
    $region67: #{pointnet_feat.1} parent=5 // pred_region
      %s1981 = ssub.s32 %s13, 2
      // Predicated region
      $region69: #{pointnet_feat.1} parent=67 // pred_check
        %p1982 = pneg %p227
      $region70: #{pointnet_feat.1} parent=67 // pred_check_branch
        %1984 = sbr.rel (%p1982) target = $region72
      $region71: #{pointnet_feat.1} parent=67 // pred_region
        %s1985 = smul.u32 8, %s27
        %p1986 = scmp.lt.s32.totalorder %s26, 1
        %s1987 = scalar_select %p1986, %s26, 1
        %p1988 = scmp.lt.s32.totalorder %s1985, 7
        %s1989 = scalar_select %p1988, %s1985, 7
        %s1990 = smul.addr %s1987, 8
        %s1991 = sadd.s32 %s1989, %s1990
        %s1992 = scalar_lea.vmem %s7, %s1991
      $region72: #{pointnet_feat.1} parent=67 // pred_fallthru
        _
    $region68: #{pointnet_feat.1} parent=5 // pred_fallthru
      _
  $region6: #{pointnet_feat.1} parent=0 // loop_footer
    %s17 = sadd.s32 1, %s13
  $region7: #{pointnet_feat.1} parent=0 // loop_footer_branch
    %12 = sbr.rel target = $region3
  $region8: #{pointnet_feat.1} parent=0 // loop_exit
    _

</llo_original>
